<compile_context>
chip_gen: v5e
topology: v5e:2x2
jax: 0.10.0
libtpu: 0.0.40
codegen_flags: <defaults>
</compile_context>

<pallas_src>
import functools

import jax
import jax.numpy as jnp
from jax import lax
from jax.experimental import pallas as pl
from jax.experimental.pallas import tpu as pltpu


# ------------------------------ fused kernel ------------------------------- #
def _seq2seq_kernel(emb_ref, wenc_ref, benc_ref, gates_ref, whh_ref,
                    watt_ref, wout_ref, bout_ref,
                    logits_ref, h_scratch, *, S, B, H, T):
    f32 = jnp.float32

    # ---- encoder: one (B*S,R)@(R,H) matmul; states stay resident in VMEM --- #
    enc = jnp.dot(emb_ref[...], wenc_ref[...],
                  preferred_element_type=f32) + benc_ref[...]          # (B*S, H)

    # enc_utt = per-utterance mean over source positions -> LSTM h0.
    h0 = jnp.concatenate(
        [jnp.mean(enc[b * S:(b + 1) * S], axis=0, keepdims=True)
         for b in range(B)],
        axis=0)                                                         # (B, H)

    whh = whh_ref[...]                                                  # (H, 4H)

    # ---- serial LSTM recurrence: ONE fused (B,H)@(H,4H) dot per step ------- #
    # Input-side projections were precomputed per token in XLA; attention and
    # readout are deferred out of the recurrence -> minimal dependence chain.
    def step(t, carry):
        h, c = carry
        gates = gates_ref[t] + jnp.dot(h, whh,
                                       preferred_element_type=f32)     # (B, 4H)
        # PyTorch gate order i, f, g, o: static lane slices of one result.
        i_g = jax.nn.sigmoid(gates[:, 0 * H:1 * H])
        f_g = jax.nn.sigmoid(gates[:, 1 * H:2 * H])
        g_g = jnp.tanh(gates[:, 2 * H:3 * H])
        o_g = jax.nn.sigmoid(gates[:, 3 * H:4 * H])
        c_new = f_g * c + i_g * g_g
        h_new = o_g * jnp.tanh(c_new)
        h_scratch[t] = h_new
        return (h_new, c_new)

    lax.fori_loop(0, T, step, (h0, jnp.zeros_like(h0)), unroll=True)

    # ---- attention + readout for ALL T steps (off the serial chain) -------- #
    h_all = h_scratch[...]                                              # (T, B, H)
    w_att = watt_ref[...]                                               # (H, H)
    w_out = wout_ref[...]                                               # (2H, V)
    b_out = bout_ref[...]                                               # (1, V)

    outs = []
    for b in range(B):                                                  # static unroll (B small)
        h_b = h_all[:, b, :]                                            # (T, H)
        enc_b = enc[b * S:(b + 1) * S]                                  # (S, H)
        q_b = jnp.dot(h_b, w_att, preferred_element_type=f32)           # (T, H)
        scores = jnp.einsum('th,sh->ts', q_b, enc_b,
                            preferred_element_type=f32)                 # (T, S)
        scores = scores - jnp.max(scores, axis=-1, keepdims=True)
        e = jnp.exp(scores)
        alpha = e * pl.reciprocal(jnp.sum(e, axis=-1, keepdims=True))   # softmax
        ctx = jnp.dot(alpha, enc_b, preferred_element_type=f32)         # (T, H)
        feats = jnp.concatenate([h_b, ctx], axis=-1)                    # (T, 2H)
        outs.append(jnp.dot(feats, w_out,
                            preferred_element_type=f32) + b_out)        # (T, V)

    # Lane-dense (T, B*V) store; wrapper reshapes back to (T, B, V).
    logits_ref[...] = jnp.concatenate(outs, axis=-1)


# ------------------------------- full forward ------------------------------ #
@jax.jit
def forward(emb_words, lf_tokens, params):
    """emb_words: (S, B, rep_size) pre-embedded utterance; lf_tokens: (T, B) int32."""
    S, B, R = emb_words.shape
    T = lf_tokens.shape[0]
    H = params["w_enc"].shape[1]
    V = params["w_out"].shape[1]

    # (S,B,R) -> (B*S,R): encoder states then land directly in per-batch row
    # blocks inside the kernel (no inter-kernel transpose / HBM round trip).
    emb_bs = jnp.transpose(emb_words, (1, 0, 2)).reshape(B * S, R)

    # Hoist the input-side LSTM projection out of the serial recurrence (XLA):
    # fold w_ih (+ bias) into the embedding table, gather per token ->
    # one lane-dense (T, B, 4H) array.
    gate_table = params["dec_embed"] @ params["w_ih"] + params["b_lstm"]   # (Vocab, 4H)
    gates_in = gate_table[lf_tokens]                                        # (T, B, 4H)

    kernel = functools.partial(_seq2seq_kernel, S=S, B=B, H=H, T=T)
    logits_flat = pl.pallas_call(
        kernel,
        out_shape=jax.ShapeDtypeStruct((T, B * V), jnp.float32),
        scratch_shapes=[pltpu.VMEM((T, B, H), jnp.float32)],
    )(emb_bs, params["w_enc"], params["b_enc"], gates_in,
      params["w_hh"], params["w_att"], params["w_out"], params["b_out"])

    return logits_flat.reshape(T, B, V)


# ------------------------------ pure-JAX reference -------------------------- #
def reference_forward(emb_words, lf_tokens, params):
    enc_words = jnp.einsum("sbr,rh->sbh", emb_words, params["w_enc"]) + params["b_enc"][0]
    enc_utt = enc_words.mean(axis=0)
    enc_b = jnp.transpose(enc_words, (1, 0, 2))
    dec_emb = params["dec_embed"][lf_tokens]
    h = enc_utt
    c = jnp.zeros_like(h)
    Hd = h.shape[-1]
    outs = []
    for t in range(lf_tokens.shape[0]):
        gates = dec_emb[t] @ params["w_ih"] + h @ params["w_hh"] + params["b_lstm"][0]
        i_g = jax.nn.sigmoid(gates[:, :Hd])
        f_g = jax.nn.sigmoid(gates[:, Hd:2 * Hd])
        g_g = jnp.tanh(gates[:, 2 * Hd:3 * Hd])
        o_g = jax.nn.sigmoid(gates[:, 3 * Hd:4 * Hd])
        c = f_g * c + i_g * g_g
        h = o_g * jnp.tanh(c)
        q = h @ params["w_att"]
        scores = jnp.sum(enc_b * q[:, None, :], axis=-1)
        alpha = jax.nn.softmax(scores, axis=-1)
        ctx = jnp.sum(enc_b * alpha[:, :, None], axis=1)
        outs.append(jnp.concatenate([h, ctx], axis=-1) @ params["w_out"] + params["b_out"][0])
    return jnp.stack(outs)


# ---------------------------------- main ------------------------------------ #
if __name__ == "__main__":
    # Small shapes consistent with the module.
    S, B, T = 8, 2, 8              # source length, batch, target (lf) length
    REP, H, E, V = 32, 32, 32, 64  # rep_size, hidden_size, embed_size, vocab

    key = jax.random.PRNGKey(0)
    ks = jax.random.split(key, 12)

    params = {
        "w_enc": 0.1 * jax.random.normal(ks[0], (REP, H), jnp.float32),
        "b_enc": 0.1 * jax.random.normal(ks[1], (1, H), jnp.float32),
        "dec_embed": 0.1 * jax.random.normal(ks[2], (V, E), jnp.float32),
        "w_ih": 0.1 * jax.random.normal(ks[3], (E, 4 * H), jnp.float32),
        "w_hh": 0.1 * jax.random.normal(ks[4], (H, 4 * H), jnp.float32),
        "b_lstm": 0.1 * jax.random.normal(ks[5], (1, 4 * H), jnp.float32),
        "w_att": 0.1 * jax.random.normal(ks[6], (H, H), jnp.float32),
        "w_out": 0.1 * jax.random.normal(ks[7], (2 * H, V), jnp.float32),
        "b_out": 0.1 * jax.random.normal(ks[8], (1, V), jnp.float32),
    }

    # Inputs: pre-embedded utterances (output of `self.embedder`) and lf tokens.
    emb_words = jax.random.normal(ks[9], (S, B, REP), jnp.float32)
    lf_tokens = jax.random.randint(ks[10], (T, B), 0, V, jnp.int32)

    logits = forward(emb_words, lf_tokens, params)
    logits = jax.block_until_ready(logits)

    ref = reference_forward(emb_words, lf_tokens, params)
    assert logits.shape == (T, B, V), logits.shape
    assert jnp.allclose(logits, ref, rtol=1e-3, atol=1e-3), \
        float(jnp.max(jnp.abs(logits - ref)))

    print("KERNEL_OK")
</pallas_src>

<mosaic_0001>
module attributes {stable_mosaic.version = 11 : i64} {
  func.func @_seq2seq_kernel(%arg0: memref<16x32xf32, #tpu.memory_space<vmem>>, %arg1: memref<32x32xf32, #tpu.memory_space<vmem>>, %arg2: memref<1x32xf32, #tpu.memory_space<vmem>>, %arg3: memref<8x2x128xf32, #tpu.memory_space<vmem>>, %arg4: memref<32x128xf32, #tpu.memory_space<vmem>>, %arg5: memref<32x32xf32, #tpu.memory_space<vmem>>, %arg6: memref<64x64xf32, #tpu.memory_space<vmem>>, %arg7: memref<1x64xf32, #tpu.memory_space<vmem>>, %arg8: memref<8x128xf32, #tpu.memory_space<vmem>>, %arg9: memref<8x2x32xf32, #tpu.memory_space<vmem>>) attributes {dimension_semantics = [], scalar_prefetch = 0 : i64, scratch_operands = 1 : i64, tpu.core_type = #tpu.core_type<tc>} {
    %c0 = arith.constant 0 : index
    %c0_0 = arith.constant 0 : index
    %0 = vector.load %arg0[%c0, %c0_0] : memref<16x32xf32, #tpu.memory_space<vmem>>, vector<16x32xf32>
    %c0_1 = arith.constant 0 : index
    %c0_2 = arith.constant 0 : index
    %1 = vector.load %arg1[%c0_1, %c0_2] : memref<32x32xf32, #tpu.memory_space<vmem>>, vector<32x32xf32>
    %cst = arith.constant dense<0.000000e+00> : vector<16x32xf32>
    %2 = tpu.matmul %0, %1, %cst {dimension_numbers = #tpu.dot_dimension_numbers<[1], [0], [0], [1], [0, 0, 1, 1], [], []>} : vector<16x32xf32>, vector<32x32xf32>, vector<16x32xf32> -> vector<16x32xf32>
    %c0_3 = arith.constant 0 : index
    %c0_4 = arith.constant 0 : index
    %3 = vector.load %arg2[%c0_3, %c0_4] : memref<1x32xf32, #tpu.memory_space<vmem>>, vector<1x32xf32>
    %4 = vector.broadcast %3 : vector<1x32xf32> to vector<16x32xf32>
    %5 = arith.addf %2, %4 : vector<16x32xf32>
    %6 = vector.extract_strided_slice %5 {offsets = [0, 0], sizes = [8, 32], strides = [1, 1]} : vector<16x32xf32> to vector<8x32xf32>
    %cst_5 = arith.constant dense<0.000000e+00> : vector<32xf32>
    %7 = vector.multi_reduction <add>, %6, %cst_5 [0] : vector<8x32xf32> to vector<32xf32>
    %8 = vector.shape_cast %7 : vector<32xf32> to vector<1x32xf32>
    %cst_6 = arith.constant 8.000000e+00 : f32
    %9 = vector.broadcast %cst_6 : f32 to vector<1x32xf32>
    %10 = arith.divf %8, %9 : vector<1x32xf32>
    %11 = vector.extract_strided_slice %5 {offsets = [8, 0], sizes = [8, 32], strides = [1, 1]} : vector<16x32xf32> to vector<8x32xf32>
    %cst_7 = arith.constant dense<0.000000e+00> : vector<32xf32>
    %12 = vector.multi_reduction <add>, %11, %cst_7 [0] : vector<8x32xf32> to vector<32xf32>
    %13 = vector.shape_cast %12 : vector<32xf32> to vector<1x32xf32>
    %cst_8 = arith.constant 8.000000e+00 : f32
    %14 = vector.broadcast %cst_8 : f32 to vector<1x32xf32>
    %15 = arith.divf %13, %14 : vector<1x32xf32>
    %16 = tpu.concatenate %10, %15 in 0 : vector<1x32xf32>, vector<1x32xf32> -> vector<2x32xf32>
    %c0_9 = arith.constant 0 : index
    %c0_10 = arith.constant 0 : index
    %17 = vector.load %arg4[%c0_9, %c0_10] : memref<32x128xf32, #tpu.memory_space<vmem>>, vector<32x128xf32>
    %cst_11 = arith.constant 0.000000e+00 : f32
    %18 = vector.broadcast %cst_11 : f32 to vector<2x32xf32>
    %c0_i32 = arith.constant 0 : i32
    %19 = arith.index_cast %c0_i32 : i32 to index
    %c0_12 = arith.constant 0 : index
    %c0_13 = arith.constant 0 : index
    %20 = vector.load %arg3[%19, %c0_12, %c0_13] : memref<8x2x128xf32, #tpu.memory_space<vmem>>, vector<1x2x128xf32>
    %21 = vector.shape_cast %20 : vector<1x2x128xf32> to vector<2x128xf32>
    %cst_14 = arith.constant dense<0.000000e+00> : vector<2x128xf32>
    %22 = tpu.matmul %16, %17, %cst_14 {dimension_numbers = #tpu.dot_dimension_numbers<[1], [0], [0], [1], [0, 0, 1, 1], [], []>} : vector<2x32xf32>, vector<32x128xf32>, vector<2x128xf32> -> vector<2x128xf32>
    %23 = arith.addf %21, %22 : vector<2x128xf32>
    %24 = vector.extract_strided_slice %23 {offsets = [0, 0], sizes = [2, 32], strides = [1, 1]} : vector<2x128xf32> to vector<2x32xf32>
    %25 = arith.negf %24 : vector<2x32xf32>
    %26 = math.exp %25 : vector<2x32xf32>
    %cst_15 = arith.constant 1.000000e+00 : f32
    %27 = vector.broadcast %cst_15 : f32 to vector<2x32xf32>
    %28 = arith.addf %27, %26 : vector<2x32xf32>
    %29 = arith.divf %27, %28 : vector<2x32xf32>
    %30 = vector.extract_strided_slice %23 {offsets = [0, 32], sizes = [2, 32], strides = [1, 1]} : vector<2x128xf32> to vector<2x32xf32>
    %31 = arith.negf %30 : vector<2x32xf32>
    %32 = math.exp %31 : vector<2x32xf32>
    %cst_16 = arith.constant 1.000000e+00 : f32
    %33 = vector.broadcast %cst_16 : f32 to vector<2x32xf32>
    %34 = arith.addf %33, %32 : vector<2x32xf32>
    %35 = arith.divf %33, %34 : vector<2x32xf32>
    %36 = vector.extract_strided_slice %23 {offsets = [0, 64], sizes = [2, 32], strides = [1, 1]} : vector<2x128xf32> to vector<2x32xf32>
    %37 = math.tanh %36 : vector<2x32xf32>
    %38 = vector.extract_strided_slice %23 {offsets = [0, 96], sizes = [2, 32], strides = [1, 1]} : vector<2x128xf32> to vector<2x32xf32>
    %39 = arith.negf %38 : vector<2x32xf32>
    %40 = math.exp %39 : vector<2x32xf32>
    %cst_17 = arith.constant 1.000000e+00 : f32
    %41 = vector.broadcast %cst_17 : f32 to vector<2x32xf32>
    %42 = arith.addf %41, %40 : vector<2x32xf32>
    %43 = arith.divf %41, %42 : vector<2x32xf32>
    %44 = arith.mulf %35, %18 : vector<2x32xf32>
    %45 = arith.mulf %29, %37 : vector<2x32xf32>
    %46 = arith.addf %44, %45 : vector<2x32xf32>
    %47 = math.tanh %46 : vector<2x32xf32>
    %48 = arith.mulf %43, %47 : vector<2x32xf32>
    %49 = arith.index_cast %c0_i32 : i32 to index
    %c0_18 = arith.constant 0 : index
    %c0_19 = arith.constant 0 : index
    %50 = vector.load %arg9[%49, %c0_18, %c0_19] : memref<8x2x32xf32, #tpu.memory_space<vmem>>, vector<1x2x32xf32>
    %51 = vector.shape_cast %50 : vector<1x2x32xf32> to vector<2x32xf32>
    %52 = vector.shape_cast %48 : vector<2x32xf32> to vector<1x2x32xf32>
    tpu.vector_store %arg9[%49, %c0_18, %c0_19], %52 {strides = array<i32>} : memref<8x2x32xf32, #tpu.memory_space<vmem>>, vector<1x2x32xf32>,
    %c1_i32 = arith.constant 1 : i32
    %53 = arith.index_cast %c1_i32 : i32 to index
    %c0_20 = arith.constant 0 : index
    %c0_21 = arith.constant 0 : index
    %54 = vector.load %arg3[%53, %c0_20, %c0_21] : memref<8x2x128xf32, #tpu.memory_space<vmem>>, vector<1x2x128xf32>
    %55 = vector.shape_cast %54 : vector<1x2x128xf32> to vector<2x128xf32>
    %cst_22 = arith.constant dense<0.000000e+00> : vector<2x128xf32>
    %56 = tpu.matmul %48, %17, %cst_22 {dimension_numbers = #tpu.dot_dimension_numbers<[1], [0], [0], [1], [0, 0, 1, 1], [], []>} : vector<2x32xf32>, vector<32x128xf32>, vector<2x128xf32> -> vector<2x128xf32>
    %57 = arith.addf %55, %56 : vector<2x128xf32>
    %58 = vector.extract_strided_slice %57 {offsets = [0, 0], sizes = [2, 32], strides = [1, 1]} : vector<2x128xf32> to vector<2x32xf32>
    %59 = arith.negf %58 : vector<2x32xf32>
    %60 = math.exp %59 : vector<2x32xf32>
    %cst_23 = arith.constant 1.000000e+00 : f32
    %61 = vector.broadcast %cst_23 : f32 to vector<2x32xf32>
    %62 = arith.addf %61, %60 : vector<2x32xf32>
    %63 = arith.divf %61, %62 : vector<2x32xf32>
    %64 = vector.extract_strided_slice %57 {offsets = [0, 32], sizes = [2, 32], strides = [1, 1]} : vector<2x128xf32> to vector<2x32xf32>
    %65 = arith.negf %64 : vector<2x32xf32>
    %66 = math.exp %65 : vector<2x32xf32>
    %cst_24 = arith.constant 1.000000e+00 : f32
    %67 = vector.broadcast %cst_24 : f32 to vector<2x32xf32>
    %68 = arith.addf %67, %66 : vector<2x32xf32>
    %69 = arith.divf %67, %68 : vector<2x32xf32>
    %70 = vector.extract_strided_slice %57 {offsets = [0, 64], sizes = [2, 32], strides = [1, 1]} : vector<2x128xf32> to vector<2x32xf32>
    %71 = math.tanh %70 : vector<2x32xf32>
    %72 = vector.extract_strided_slice %57 {offsets = [0, 96], sizes = [2, 32], strides = [1, 1]} : vector<2x128xf32> to vector<2x32xf32>
    %73 = arith.negf %72 : vector<2x32xf32>
    %74 = math.exp %73 : vector<2x32xf32>
    %cst_25 = arith.constant 1.000000e+00 : f32
    %75 = vector.broadcast %cst_25 : f32 to vector<2x32xf32>
    %76 = arith.addf %75, %74 : vector<2x32xf32>
    %77 = arith.divf %75, %76 : vector<2x32xf32>
    %78 = arith.mulf %69, %46 : vector<2x32xf32>
    %79 = arith.mulf %63, %71 : vector<2x32xf32>
    %80 = arith.addf %78, %79 : vector<2x32xf32>
    %81 = math.tanh %80 : vector<2x32xf32>
    %82 = arith.mulf %77, %81 : vector<2x32xf32>
    %83 = arith.index_cast %c1_i32 : i32 to index
    %c0_26 = arith.constant 0 : index
    %c0_27 = arith.constant 0 : index
    %84 = vector.load %arg9[%83, %c0_26, %c0_27] : memref<8x2x32xf32, #tpu.memory_space<vmem>>, vector<1x2x32xf32>
    %85 = vector.shape_cast %84 : vector<1x2x32xf32> to vector<2x32xf32>
    %86 = vector.shape_cast %82 : vector<2x32xf32> to vector<1x2x32xf32>
    tpu.vector_store %arg9[%83, %c0_26, %c0_27], %86 {strides = array<i32>} : memref<8x2x32xf32, #tpu.memory_space<vmem>>, vector<1x2x32xf32>,
    %c2_i32 = arith.constant 2 : i32
    %87 = arith.index_cast %c2_i32 : i32 to index
    %c0_28 = arith.constant 0 : index
    %c0_29 = arith.constant 0 : index
    %88 = vector.load %arg3[%87, %c0_28, %c0_29] : memref<8x2x128xf32, #tpu.memory_space<vmem>>, vector<1x2x128xf32>
    %89 = vector.shape_cast %88 : vector<1x2x128xf32> to vector<2x128xf32>
    %cst_30 = arith.constant dense<0.000000e+00> : vector<2x128xf32>
    %90 = tpu.matmul %82, %17, %cst_30 {dimension_numbers = #tpu.dot_dimension_numbers<[1], [0], [0], [1], [0, 0, 1, 1], [], []>} : vector<2x32xf32>, vector<32x128xf32>, vector<2x128xf32> -> vector<2x128xf32>
    %91 = arith.addf %89, %90 : vector<2x128xf32>
    %92 = vector.extract_strided_slice %91 {offsets = [0, 0], sizes = [2, 32], strides = [1, 1]} : vector<2x128xf32> to vector<2x32xf32>
    %93 = arith.negf %92 : vector<2x32xf32>
    %94 = math.exp %93 : vector<2x32xf32>
    %cst_31 = arith.constant 1.000000e+00 : f32
    %95 = vector.broadcast %cst_31 : f32 to vector<2x32xf32>
    %96 = arith.addf %95, %94 : vector<2x32xf32>
    %97 = arith.divf %95, %96 : vector<2x32xf32>
    %98 = vector.extract_strided_slice %91 {offsets = [0, 32], sizes = [2, 32], strides = [1, 1]} : vector<2x128xf32> to vector<2x32xf32>
    %99 = arith.negf %98 : vector<2x32xf32>
    %100 = math.exp %99 : vector<2x32xf32>
    %cst_32 = arith.constant 1.000000e+00 : f32
    %101 = vector.broadcast %cst_32 : f32 to vector<2x32xf32>
    %102 = arith.addf %101, %100 : vector<2x32xf32>
    %103 = arith.divf %101, %102 : vector<2x32xf32>
    %104 = vector.extract_strided_slice %91 {offsets = [0, 64], sizes = [2, 32], strides = [1, 1]} : vector<2x128xf32> to vector<2x32xf32>
    %105 = math.tanh %104 : vector<2x32xf32>
    %106 = vector.extract_strided_slice %91 {offsets = [0, 96], sizes = [2, 32], strides = [1, 1]} : vector<2x128xf32> to vector<2x32xf32>
    %107 = arith.negf %106 : vector<2x32xf32>
    %108 = math.exp %107 : vector<2x32xf32>
    %cst_33 = arith.constant 1.000000e+00 : f32
    %109 = vector.broadcast %cst_33 : f32 to vector<2x32xf32>
    %110 = arith.addf %109, %108 : vector<2x32xf32>
    %111 = arith.divf %109, %110 : vector<2x32xf32>
    %112 = arith.mulf %103, %80 : vector<2x32xf32>
    %113 = arith.mulf %97, %105 : vector<2x32xf32>
    %114 = arith.addf %112, %113 : vector<2x32xf32>
    %115 = math.tanh %114 : vector<2x32xf32>
    %116 = arith.mulf %111, %115 : vector<2x32xf32>
    %117 = arith.index_cast %c2_i32 : i32 to index
    %c0_34 = arith.constant 0 : index
    %c0_35 = arith.constant 0 : index
    %118 = vector.load %arg9[%117, %c0_34, %c0_35] : memref<8x2x32xf32, #tpu.memory_space<vmem>>, vector<1x2x32xf32>
    %119 = vector.shape_cast %118 : vector<1x2x32xf32> to vector<2x32xf32>
    %120 = vector.shape_cast %116 : vector<2x32xf32> to vector<1x2x32xf32>
    tpu.vector_store %arg9[%117, %c0_34, %c0_35], %120 {strides = array<i32>} : memref<8x2x32xf32, #tpu.memory_space<vmem>>, vector<1x2x32xf32>,
    %c3_i32 = arith.constant 3 : i32
    %121 = arith.index_cast %c3_i32 : i32 to index
    %c0_36 = arith.constant 0 : index
    %c0_37 = arith.constant 0 : index
    %122 = vector.load %arg3[%121, %c0_36, %c0_37] : memref<8x2x128xf32, #tpu.memory_space<vmem>>, vector<1x2x128xf32>
    %123 = vector.shape_cast %122 : vector<1x2x128xf32> to vector<2x128xf32>
    %cst_38 = arith.constant dense<0.000000e+00> : vector<2x128xf32>
    %124 = tpu.matmul %116, %17, %cst_38 {dimension_numbers = #tpu.dot_dimension_numbers<[1], [0], [0], [1], [0, 0, 1, 1], [], []>} : vector<2x32xf32>, vector<32x128xf32>, vector<2x128xf32> -> vector<2x128xf32>
    %125 = arith.addf %123, %124 : vector<2x128xf32>
    %126 = vector.extract_strided_slice %125 {offsets = [0, 0], sizes = [2, 32], strides = [1, 1]} : vector<2x128xf32> to vector<2x32xf32>
    %127 = arith.negf %126 : vector<2x32xf32>
    %128 = math.exp %127 : vector<2x32xf32>
    %cst_39 = arith.constant 1.000000e+00 : f32
    %129 = vector.broadcast %cst_39 : f32 to vector<2x32xf32>
    %130 = arith.addf %129, %128 : vector<2x32xf32>
    %131 = arith.divf %129, %130 : vector<2x32xf32>
    %132 = vector.extract_strided_slice %125 {offsets = [0, 32], sizes = [2, 32], strides = [1, 1]} : vector<2x128xf32> to vector<2x32xf32>
    %133 = arith.negf %132 : vector<2x32xf32>
    %134 = math.exp %133 : vector<2x32xf32>
    %cst_40 = arith.constant 1.000000e+00 : f32
    %135 = vector.broadcast %cst_40 : f32 to vector<2x32xf32>
    %136 = arith.addf %135, %134 : vector<2x32xf32>
    %137 = arith.divf %135, %136 : vector<2x32xf32>
    %138 = vector.extract_strided_slice %125 {offsets = [0, 64], sizes = [2, 32], strides = [1, 1]} : vector<2x128xf32> to vector<2x32xf32>
    %139 = math.tanh %138 : vector<2x32xf32>
    %140 = vector.extract_strided_slice %125 {offsets = [0, 96], sizes = [2, 32], strides = [1, 1]} : vector<2x128xf32> to vector<2x32xf32>
    %141 = arith.negf %140 : vector<2x32xf32>
    %142 = math.exp %141 : vector<2x32xf32>
    %cst_41 = arith.constant 1.000000e+00 : f32
    %143 = vector.broadcast %cst_41 : f32 to vector<2x32xf32>
    %144 = arith.addf %143, %142 : vector<2x32xf32>
    %145 = arith.divf %143, %144 : vector<2x32xf32>
    %146 = arith.mulf %137, %114 : vector<2x32xf32>
    %147 = arith.mulf %131, %139 : vector<2x32xf32>
    %148 = arith.addf %146, %147 : vector<2x32xf32>
    %149 = math.tanh %148 : vector<2x32xf32>
    %150 = arith.mulf %145, %149 : vector<2x32xf32>
    %151 = arith.index_cast %c3_i32 : i32 to index
    %c0_42 = arith.constant 0 : index
    %c0_43 = arith.constant 0 : index
    %152 = vector.load %arg9[%151, %c0_42, %c0_43] : memref<8x2x32xf32, #tpu.memory_space<vmem>>, vector<1x2x32xf32>
    %153 = vector.shape_cast %152 : vector<1x2x32xf32> to vector<2x32xf32>
    %154 = vector.shape_cast %150 : vector<2x32xf32> to vector<1x2x32xf32>
    tpu.vector_store %arg9[%151, %c0_42, %c0_43], %154 {strides = array<i32>} : memref<8x2x32xf32, #tpu.memory_space<vmem>>, vector<1x2x32xf32>,
    %c4_i32 = arith.constant 4 : i32
    %155 = arith.index_cast %c4_i32 : i32 to index
    %c0_44 = arith.constant 0 : index
    %c0_45 = arith.constant 0 : index
    %156 = vector.load %arg3[%155, %c0_44, %c0_45] : memref<8x2x128xf32, #tpu.memory_space<vmem>>, vector<1x2x128xf32>
    %157 = vector.shape_cast %156 : vector<1x2x128xf32> to vector<2x128xf32>
    %cst_46 = arith.constant dense<0.000000e+00> : vector<2x128xf32>
    %158 = tpu.matmul %150, %17, %cst_46 {dimension_numbers = #tpu.dot_dimension_numbers<[1], [0], [0], [1], [0, 0, 1, 1], [], []>} : vector<2x32xf32>, vector<32x128xf32>, vector<2x128xf32> -> vector<2x128xf32>
    %159 = arith.addf %157, %158 : vector<2x128xf32>
    %160 = vector.extract_strided_slice %159 {offsets = [0, 0], sizes = [2, 32], strides = [1, 1]} : vector<2x128xf32> to vector<2x32xf32>
    %161 = arith.negf %160 : vector<2x32xf32>
    %162 = math.exp %161 : vector<2x32xf32>
    %cst_47 = arith.constant 1.000000e+00 : f32
    %163 = vector.broadcast %cst_47 : f32 to vector<2x32xf32>
    %164 = arith.addf %163, %162 : vector<2x32xf32>
    %165 = arith.divf %163, %164 : vector<2x32xf32>
    %166 = vector.extract_strided_slice %159 {offsets = [0, 32], sizes = [2, 32], strides = [1, 1]} : vector<2x128xf32> to vector<2x32xf32>
    %167 = arith.negf %166 : vector<2x32xf32>
    %168 = math.exp %167 : vector<2x32xf32>
    %cst_48 = arith.constant 1.000000e+00 : f32
    %169 = vector.broadcast %cst_48 : f32 to vector<2x32xf32>
    %170 = arith.addf %169, %168 : vector<2x32xf32>
    %171 = arith.divf %169, %170 : vector<2x32xf32>
    %172 = vector.extract_strided_slice %159 {offsets = [0, 64], sizes = [2, 32], strides = [1, 1]} : vector<2x128xf32> to vector<2x32xf32>
    %173 = math.tanh %172 : vector<2x32xf32>
    %174 = vector.extract_strided_slice %159 {offsets = [0, 96], sizes = [2, 32], strides = [1, 1]} : vector<2x128xf32> to vector<2x32xf32>
    %175 = arith.negf %174 : vector<2x32xf32>
    %176 = math.exp %175 : vector<2x32xf32>
    %cst_49 = arith.constant 1.000000e+00 : f32
    %177 = vector.broadcast %cst_49 : f32 to vector<2x32xf32>
    %178 = arith.addf %177, %176 : vector<2x32xf32>
    %179 = arith.divf %177, %178 : vector<2x32xf32>
    %180 = arith.mulf %171, %148 : vector<2x32xf32>
    %181 = arith.mulf %165, %173 : vector<2x32xf32>
    %182 = arith.addf %180, %181 : vector<2x32xf32>
    %183 = math.tanh %182 : vector<2x32xf32>
    %184 = arith.mulf %179, %183 : vector<2x32xf32>
    %185 = arith.index_cast %c4_i32 : i32 to index
    %c0_50 = arith.constant 0 : index
    %c0_51 = arith.constant 0 : index
    %186 = vector.load %arg9[%185, %c0_50, %c0_51] : memref<8x2x32xf32, #tpu.memory_space<vmem>>, vector<1x2x32xf32>
    %187 = vector.shape_cast %186 : vector<1x2x32xf32> to vector<2x32xf32>
    %188 = vector.shape_cast %184 : vector<2x32xf32> to vector<1x2x32xf32>
    tpu.vector_store %arg9[%185, %c0_50, %c0_51], %188 {strides = array<i32>} : memref<8x2x32xf32, #tpu.memory_space<vmem>>, vector<1x2x32xf32>,
    %c5_i32 = arith.constant 5 : i32
    %189 = arith.index_cast %c5_i32 : i32 to index
    %c0_52 = arith.constant 0 : index
    %c0_53 = arith.constant 0 : index
    %190 = vector.load %arg3[%189, %c0_52, %c0_53] : memref<8x2x128xf32, #tpu.memory_space<vmem>>, vector<1x2x128xf32>
    %191 = vector.shape_cast %190 : vector<1x2x128xf32> to vector<2x128xf32>
    %cst_54 = arith.constant dense<0.000000e+00> : vector<2x128xf32>
    %192 = tpu.matmul %184, %17, %cst_54 {dimension_numbers = #tpu.dot_dimension_numbers<[1], [0], [0], [1], [0, 0, 1, 1], [], []>} : vector<2x32xf32>, vector<32x128xf32>, vector<2x128xf32> -> vector<2x128xf32>
    %193 = arith.addf %191, %192 : vector<2x128xf32>
    %194 = vector.extract_strided_slice %193 {offsets = [0, 0], sizes = [2, 32], strides = [1, 1]} : vector<2x128xf32> to vector<2x32xf32>
    %195 = arith.negf %194 : vector<2x32xf32>
    %196 = math.exp %195 : vector<2x32xf32>
    %cst_55 = arith.constant 1.000000e+00 : f32
    %197 = vector.broadcast %cst_55 : f32 to vector<2x32xf32>
    %198 = arith.addf %197, %196 : vector<2x32xf32>
    %199 = arith.divf %197, %198 : vector<2x32xf32>
    %200 = vector.extract_strided_slice %193 {offsets = [0, 32], sizes = [2, 32], strides = [1, 1]} : vector<2x128xf32> to vector<2x32xf32>
    %201 = arith.negf %200 : vector<2x32xf32>
    %202 = math.exp %201 : vector<2x32xf32>
    %cst_56 = arith.constant 1.000000e+00 : f32
    %203 = vector.broadcast %cst_56 : f32 to vector<2x32xf32>
    %204 = arith.addf %203, %202 : vector<2x32xf32>
    %205 = arith.divf %203, %204 : vector<2x32xf32>
    %206 = vector.extract_strided_slice %193 {offsets = [0, 64], sizes = [2, 32], strides = [1, 1]} : vector<2x128xf32> to vector<2x32xf32>
    %207 = math.tanh %206 : vector<2x32xf32>
    %208 = vector.extract_strided_slice %193 {offsets = [0, 96], sizes = [2, 32], strides = [1, 1]} : vector<2x128xf32> to vector<2x32xf32>
    %209 = arith.negf %208 : vector<2x32xf32>
    %210 = math.exp %209 : vector<2x32xf32>
    %cst_57 = arith.constant 1.000000e+00 : f32
    %211 = vector.broadcast %cst_57 : f32 to vector<2x32xf32>
    %212 = arith.addf %211, %210 : vector<2x32xf32>
    %213 = arith.divf %211, %212 : vector<2x32xf32>
    %214 = arith.mulf %205, %182 : vector<2x32xf32>
    %215 = arith.mulf %199, %207 : vector<2x32xf32>
    %216 = arith.addf %214, %215 : vector<2x32xf32>
    %217 = math.tanh %216 : vector<2x32xf32>
    %218 = arith.mulf %213, %217 : vector<2x32xf32>
    %219 = arith.index_cast %c5_i32 : i32 to index
    %c0_58 = arith.constant 0 : index
    %c0_59 = arith.constant 0 : index
    %220 = vector.load %arg9[%219, %c0_58, %c0_59] : memref<8x2x32xf32, #tpu.memory_space<vmem>>, vector<1x2x32xf32>
    %221 = vector.shape_cast %220 : vector<1x2x32xf32> to vector<2x32xf32>
    %222 = vector.shape_cast %218 : vector<2x32xf32> to vector<1x2x32xf32>
    tpu.vector_store %arg9[%219, %c0_58, %c0_59], %222 {strides = array<i32>} : memref<8x2x32xf32, #tpu.memory_space<vmem>>, vector<1x2x32xf32>,
    %c6_i32 = arith.constant 6 : i32
    %223 = arith.index_cast %c6_i32 : i32 to index
    %c0_60 = arith.constant 0 : index
    %c0_61 = arith.constant 0 : index
    %224 = vector.load %arg3[%223, %c0_60, %c0_61] : memref<8x2x128xf32, #tpu.memory_space<vmem>>, vector<1x2x128xf32>
    %225 = vector.shape_cast %224 : vector<1x2x128xf32> to vector<2x128xf32>
    %cst_62 = arith.constant dense<0.000000e+00> : vector<2x128xf32>
    %226 = tpu.matmul %218, %17, %cst_62 {dimension_numbers = #tpu.dot_dimension_numbers<[1], [0], [0], [1], [0, 0, 1, 1], [], []>} : vector<2x32xf32>, vector<32x128xf32>, vector<2x128xf32> -> vector<2x128xf32>
    %227 = arith.addf %225, %226 : vector<2x128xf32>
    %228 = vector.extract_strided_slice %227 {offsets = [0, 0], sizes = [2, 32], strides = [1, 1]} : vector<2x128xf32> to vector<2x32xf32>
    %229 = arith.negf %228 : vector<2x32xf32>
    %230 = math.exp %229 : vector<2x32xf32>
    %cst_63 = arith.constant 1.000000e+00 : f32
    %231 = vector.broadcast %cst_63 : f32 to vector<2x32xf32>
    %232 = arith.addf %231, %230 : vector<2x32xf32>
    %233 = arith.divf %231, %232 : vector<2x32xf32>
    %234 = vector.extract_strided_slice %227 {offsets = [0, 32], sizes = [2, 32], strides = [1, 1]} : vector<2x128xf32> to vector<2x32xf32>
    %235 = arith.negf %234 : vector<2x32xf32>
    %236 = math.exp %235 : vector<2x32xf32>
    %cst_64 = arith.constant 1.000000e+00 : f32
    %237 = vector.broadcast %cst_64 : f32 to vector<2x32xf32>
    %238 = arith.addf %237, %236 : vector<2x32xf32>
    %239 = arith.divf %237, %238 : vector<2x32xf32>
    %240 = vector.extract_strided_slice %227 {offsets = [0, 64], sizes = [2, 32], strides = [1, 1]} : vector<2x128xf32> to vector<2x32xf32>
    %241 = math.tanh %240 : vector<2x32xf32>
    %242 = vector.extract_strided_slice %227 {offsets = [0, 96], sizes = [2, 32], strides = [1, 1]} : vector<2x128xf32> to vector<2x32xf32>
    %243 = arith.negf %242 : vector<2x32xf32>
    %244 = math.exp %243 : vector<2x32xf32>
    %cst_65 = arith.constant 1.000000e+00 : f32
    %245 = vector.broadcast %cst_65 : f32 to vector<2x32xf32>
    %246 = arith.addf %245, %244 : vector<2x32xf32>
    %247 = arith.divf %245, %246 : vector<2x32xf32>
    %248 = arith.mulf %239, %216 : vector<2x32xf32>
    %249 = arith.mulf %233, %241 : vector<2x32xf32>
    %250 = arith.addf %248, %249 : vector<2x32xf32>
    %251 = math.tanh %250 : vector<2x32xf32>
    %252 = arith.mulf %247, %251 : vector<2x32xf32>
    %253 = arith.index_cast %c6_i32 : i32 to index
    %c0_66 = arith.constant 0 : index
    %c0_67 = arith.constant 0 : index
    %254 = vector.load %arg9[%253, %c0_66, %c0_67] : memref<8x2x32xf32, #tpu.memory_space<vmem>>, vector<1x2x32xf32>
    %255 = vector.shape_cast %254 : vector<1x2x32xf32> to vector<2x32xf32>
    %256 = vector.shape_cast %252 : vector<2x32xf32> to vector<1x2x32xf32>
    tpu.vector_store %arg9[%253, %c0_66, %c0_67], %256 {strides = array<i32>} : memref<8x2x32xf32, #tpu.memory_space<vmem>>, vector<1x2x32xf32>,
    %c7_i32 = arith.constant 7 : i32
    %257 = arith.index_cast %c7_i32 : i32 to index
    %c0_68 = arith.constant 0 : index
    %c0_69 = arith.constant 0 : index
    %258 = vector.load %arg3[%257, %c0_68, %c0_69] : memref<8x2x128xf32, #tpu.memory_space<vmem>>, vector<1x2x128xf32>
    %259 = vector.shape_cast %258 : vector<1x2x128xf32> to vector<2x128xf32>
    %cst_70 = arith.constant dense<0.000000e+00> : vector<2x128xf32>
    %260 = tpu.matmul %252, %17, %cst_70 {dimension_numbers = #tpu.dot_dimension_numbers<[1], [0], [0], [1], [0, 0, 1, 1], [], []>} : vector<2x32xf32>, vector<32x128xf32>, vector<2x128xf32> -> vector<2x128xf32>
    %261 = arith.addf %259, %260 : vector<2x128xf32>
    %262 = vector.extract_strided_slice %261 {offsets = [0, 0], sizes = [2, 32], strides = [1, 1]} : vector<2x128xf32> to vector<2x32xf32>
    %263 = arith.negf %262 : vector<2x32xf32>
    %264 = math.exp %263 : vector<2x32xf32>
    %cst_71 = arith.constant 1.000000e+00 : f32
    %265 = vector.broadcast %cst_71 : f32 to vector<2x32xf32>
    %266 = arith.addf %265, %264 : vector<2x32xf32>
    %267 = arith.divf %265, %266 : vector<2x32xf32>
    %268 = vector.extract_strided_slice %261 {offsets = [0, 32], sizes = [2, 32], strides = [1, 1]} : vector<2x128xf32> to vector<2x32xf32>
    %269 = arith.negf %268 : vector<2x32xf32>
    %270 = math.exp %269 : vector<2x32xf32>
    %cst_72 = arith.constant 1.000000e+00 : f32
    %271 = vector.broadcast %cst_72 : f32 to vector<2x32xf32>
    %272 = arith.addf %271, %270 : vector<2x32xf32>
    %273 = arith.divf %271, %272 : vector<2x32xf32>
    %274 = vector.extract_strided_slice %261 {offsets = [0, 64], sizes = [2, 32], strides = [1, 1]} : vector<2x128xf32> to vector<2x32xf32>
    %275 = math.tanh %274 : vector<2x32xf32>
    %276 = vector.extract_strided_slice %261 {offsets = [0, 96], sizes = [2, 32], strides = [1, 1]} : vector<2x128xf32> to vector<2x32xf32>
    %277 = arith.negf %276 : vector<2x32xf32>
    %278 = math.exp %277 : vector<2x32xf32>
    %cst_73 = arith.constant 1.000000e+00 : f32
    %279 = vector.broadcast %cst_73 : f32 to vector<2x32xf32>
    %280 = arith.addf %279, %278 : vector<2x32xf32>
    %281 = arith.divf %279, %280 : vector<2x32xf32>
    %282 = arith.mulf %273, %250 : vector<2x32xf32>
    %283 = arith.mulf %267, %275 : vector<2x32xf32>
    %284 = arith.addf %282, %283 : vector<2x32xf32>
    %285 = math.tanh %284 : vector<2x32xf32>
    %286 = arith.mulf %281, %285 : vector<2x32xf32>
    %287 = arith.index_cast %c7_i32 : i32 to index
    %c0_74 = arith.constant 0 : index
    %c0_75 = arith.constant 0 : index
    %288 = vector.load %arg9[%287, %c0_74, %c0_75] : memref<8x2x32xf32, #tpu.memory_space<vmem>>, vector<1x2x32xf32>
    %289 = vector.shape_cast %288 : vector<1x2x32xf32> to vector<2x32xf32>
    %290 = vector.shape_cast %286 : vector<2x32xf32> to vector<1x2x32xf32>
    tpu.vector_store %arg9[%287, %c0_74, %c0_75], %290 {strides = array<i32>} : memref<8x2x32xf32, #tpu.memory_space<vmem>>, vector<1x2x32xf32>,
    %c8_i32 = arith.constant 8 : i32
    %c0_76 = arith.constant 0 : index
    %c0_77 = arith.constant 0 : index
    %c0_78 = arith.constant 0 : index
    %291 = vector.load %arg9[%c0_76, %c0_77, %c0_78] : memref<8x2x32xf32, #tpu.memory_space<vmem>>, vector<8x2x32xf32>
    %c0_79 = arith.constant 0 : index
    %c0_80 = arith.constant 0 : index
    %292 = vector.load %arg5[%c0_79, %c0_80] : memref<32x32xf32, #tpu.memory_space<vmem>>, vector<32x32xf32>
    %c0_81 = arith.constant 0 : index
    %c0_82 = arith.constant 0 : index
    %293 = vector.load %arg6[%c0_81, %c0_82] : memref<64x64xf32, #tpu.memory_space<vmem>>, vector<64x64xf32>
    %c0_83 = arith.constant 0 : index
    %c0_84 = arith.constant 0 : index
    %294 = vector.load %arg7[%c0_83, %c0_84] : memref<1x64xf32, #tpu.memory_space<vmem>>, vector<1x64xf32>
    %295 = vector.extract_strided_slice %291 {offsets = [0, 0, 0], sizes = [8, 1, 32], strides = [1, 1, 1]} : vector<8x2x32xf32> to vector<8x1x32xf32>
    %296 = vector.shape_cast %295 : vector<8x1x32xf32> to vector<8x32xf32>
    %297 = vector.extract_strided_slice %5 {offsets = [0, 0], sizes = [8, 32], strides = [1, 1]} : vector<16x32xf32> to vector<8x32xf32>
    %cst_85 = arith.constant dense<0.000000e+00> : vector<8x32xf32>
    %298 = tpu.matmul %296, %292, %cst_85 {dimension_numbers = #tpu.dot_dimension_numbers<[1], [0], [0], [1], [0, 0, 1, 1], [], []>} : vector<8x32xf32>, vector<32x32xf32>, vector<8x32xf32> -> vector<8x32xf32>
    "tpu.trace_start"() <{level = 10 : i32, message = "th,sh->ts"}> : () -> ()
    %cst_86 = arith.constant dense<0.000000e+00> : vector<8x8xf32>
    %299 = tpu.matmul %298, %297, %cst_86 {dimension_numbers = #tpu.dot_dimension_numbers<[1], [1], [0], [0], [0, 0, 1, 0], [], []>} : vector<8x32xf32>, vector<8x32xf32>, vector<8x8xf32> -> vector<8x8xf32>
    "tpu.trace_stop"() : () -> ()
    %cst_87 = arith.constant dense<0xFF800000> : vector<8xf32>
    %300 = vector.multi_reduction <maximumf>, %299, %cst_87 [1] : vector<8x8xf32> to vector<8xf32>
    %301 = vector.shape_cast %300 : vector<8xf32> to vector<8x1xf32>
    %302 = vector.broadcast %301 : vector<8x1xf32> to vector<8x8xf32>
    %303 = arith.subf %299, %302 : vector<8x8xf32>
    %304 = math.exp %303 : vector<8x8xf32>
    %cst_88 = arith.constant dense<0.000000e+00> : vector<8xf32>
    %305 = vector.multi_reduction <add>, %304, %cst_88 [1] : vector<8x8xf32> to vector<8xf32>
    %306 = vector.shape_cast %305 : vector<8xf32> to vector<8x1xf32>
    %307 = tpu.reciprocal %306 : vector<8x1xf32> -> vector<8x1xf32>
    %308 = vector.broadcast %307 : vector<8x1xf32> to vector<8x8xf32>
    %309 = arith.mulf %304, %308 : vector<8x8xf32>
    %cst_89 = arith.constant dense<0.000000e+00> : vector<8x32xf32>
    %310 = tpu.matmul %309, %297, %cst_89 {dimension_numbers = #tpu.dot_dimension_numbers<[1], [0], [0], [1], [0, 0, 1, 1], [], []>} : vector<8x8xf32>, vector<8x32xf32>, vector<8x32xf32> -> vector<8x32xf32>
    %311 = tpu.concatenate %296, %310 in 1 : vector<8x32xf32>, vector<8x32xf32> -> vector<8x64xf32>
    %cst_90 = arith.constant dense<0.000000e+00> : vector<8x64xf32>
    %312 = tpu.matmul %311, %293, %cst_90 {dimension_numbers = #tpu.dot_dimension_numbers<[1], [0], [0], [1], [0, 0, 1, 1], [], []>} : vector<8x64xf32>, vector<64x64xf32>, vector<8x64xf32> -> vector<8x64xf32>
    %313 = vector.broadcast %294 : vector<1x64xf32> to vector<8x64xf32>
    %314 = arith.addf %312, %313 : vector<8x64xf32>
    %315 = vector.extract_strided_slice %291 {offsets = [0, 1, 0], sizes = [8, 1, 32], strides = [1, 1, 1]} : vector<8x2x32xf32> to vector<8x1x32xf32>
    %316 = vector.shape_cast %315 : vector<8x1x32xf32> to vector<8x32xf32>
    %317 = vector.extract_strided_slice %5 {offsets = [8, 0], sizes = [8, 32], strides = [1, 1]} : vector<16x32xf32> to vector<8x32xf32>
    %cst_91 = arith.constant dense<0.000000e+00> : vector<8x32xf32>
    %318 = tpu.matmul %316, %292, %cst_91 {dimension_numbers = #tpu.dot_dimension_numbers<[1], [0], [0], [1], [0, 0, 1, 1], [], []>} : vector<8x32xf32>, vector<32x32xf32>, vector<8x32xf32> -> vector<8x32xf32>
    "tpu.trace_start"() <{level = 10 : i32, message = "th,sh->ts"}> : () -> ()
    %cst_92 = arith.constant dense<0.000000e+00> : vector<8x8xf32>
    %319 = tpu.matmul %318, %317, %cst_92 {dimension_numbers = #tpu.dot_dimension_numbers<[1], [1], [0], [0], [0, 0, 1, 0], [], []>} : vector<8x32xf32>, vector<8x32xf32>, vector<8x8xf32> -> vector<8x8xf32>
    "tpu.trace_stop"() : () -> ()
    %cst_93 = arith.constant dense<0xFF800000> : vector<8xf32>
    %320 = vector.multi_reduction <maximumf>, %319, %cst_93 [1] : vector<8x8xf32> to vector<8xf32>
    %321 = vector.shape_cast %320 : vector<8xf32> to vector<8x1xf32>
    %322 = vector.broadcast %321 : vector<8x1xf32> to vector<8x8xf32>
    %323 = arith.subf %319, %322 : vector<8x8xf32>
    %324 = math.exp %323 : vector<8x8xf32>
    %cst_94 = arith.constant dense<0.000000e+00> : vector<8xf32>
    %325 = vector.multi_reduction <add>, %324, %cst_94 [1] : vector<8x8xf32> to vector<8xf32>
    %326 = vector.shape_cast %325 : vector<8xf32> to vector<8x1xf32>
    %327 = tpu.reciprocal %326 : vector<8x1xf32> -> vector<8x1xf32>
    %328 = vector.broadcast %327 : vector<8x1xf32> to vector<8x8xf32>
    %329 = arith.mulf %324, %328 : vector<8x8xf32>
    %cst_95 = arith.constant dense<0.000000e+00> : vector<8x32xf32>
    %330 = tpu.matmul %329, %317, %cst_95 {dimension_numbers = #tpu.dot_dimension_numbers<[1], [0], [0], [1], [0, 0, 1, 1], [], []>} : vector<8x8xf32>, vector<8x32xf32>, vector<8x32xf32> -> vector<8x32xf32>
    %331 = tpu.concatenate %316, %330 in 1 : vector<8x32xf32>, vector<8x32xf32> -> vector<8x64xf32>
    %cst_96 = arith.constant dense<0.000000e+00> : vector<8x64xf32>
    %332 = tpu.matmul %331, %293, %cst_96 {dimension_numbers = #tpu.dot_dimension_numbers<[1], [0], [0], [1], [0, 0, 1, 1], [], []>} : vector<8x64xf32>, vector<64x64xf32>, vector<8x64xf32> -> vector<8x64xf32>
    %333 = vector.broadcast %294 : vector<1x64xf32> to vector<8x64xf32>
    %334 = arith.addf %332, %333 : vector<8x64xf32>
    %335 = tpu.concatenate %314, %334 in 1 : vector<8x64xf32>, vector<8x64xf32> -> vector<8x128xf32>
    %c0_97 = arith.constant 0 : index
    %c0_98 = arith.constant 0 : index
    %336 = vector.load %arg8[%c0_97, %c0_98] : memref<8x128xf32, #tpu.memory_space<vmem>>, vector<8x128xf32>
    tpu.vector_store %arg8[%c0_97, %c0_98], %335 {strides = array<i32>} : memref<8x128xf32, #tpu.memory_space<vmem>>, vector<8x128xf32>,
    return
  }
}

</mosaic_0001>

<llo_original>
// kernel: forward.1
$region0: #{forward.1}
  #allocation0 [shape = 'u32[]', space=smem, size = 0x4, offset = 0x4, fixed_abs, tag = 'smem constant byte address 0x4 - core index']
  #allocation1 [shape = 'u32[72,128]{1,0:T(1,128)}', space=vmem, size = 0x9000, scoped, tag = 'internal scratch']
  #allocation2 [shape = 'f32[8,2,32]{2,1,0:T(2,128)}', space=vmem, size = 0x2000, scoped, tag = 'scratch operand']
  %s0 = inlined_call_operand.vmem [shape: f32[16,32], index: 0, kind: input, shape index: {}]
  %s1 = inlined_call_operand.vmem [shape: f32[32,32], index: 1, kind: input, shape index: {}]
  %s2 = inlined_call_operand.vmem [shape: f32[1,32], index: 2, kind: input, shape index: {}]
  %s3 = inlined_call_operand.vmem [shape: f32[8,2,128], index: 3, kind: input, shape index: {}]
  %s4 = inlined_call_operand.vmem [shape: f32[32,128], index: 4, kind: input, shape index: {}]
  %s5 = inlined_call_operand.vmem [shape: f32[32,32], index: 5, kind: input, shape index: {}]
  %s6 = inlined_call_operand.vmem [shape: f32[64,64], index: 6, kind: input, shape index: {}]
  %s7 = inlined_call_operand.vmem [shape: f32[1,64], index: 7, kind: input, shape index: {}]
  %s8 = inlined_call_operand.vmem [shape: f32[8,128], index: 8, kind: output, shape index: {}]
  %s9 = sld [smem:[#allocation0]]
  $region42: #{forward.1} parent=0
    _
  %s11 = ssub.s32 1, %s9
  %s12 = scalar_select 0, %s11, %s9
  // Predicated region
  $region2: #{forward.1} parent=0 // pred_check
    _
  $region3: #{forward.1} parent=0 // pred_check_branch
    %14 = sbr.rel (0) target = $region5
  $region4: #{forward.1} parent=0 // pred_region
    _
  $region5: #{forward.1} parent=0 // pred_fallthru
    _
  // Predicated region
  $region6: #{forward.1} parent=0 // pred_check
    _
  $region7: #{forward.1} parent=0 // pred_check_branch
    %16 = sbr.rel (0) target = $region9
  $region8: #{forward.1} parent=0 // pred_region
    _
  $region9: #{forward.1} parent=0 // pred_fallthru
    _
  // Predicated region
  $region10: #{forward.1} parent=0 // pred_check
    _
  $region11: #{forward.1} parent=0 // pred_check_branch
    %18 = sbr.rel (0) target = $region13
  $region12: #{forward.1} parent=0 // pred_region
    _
  $region13: #{forward.1} parent=0 // pred_fallthru
    _
  // Predicated region
  $region14: #{forward.1} parent=0 // pred_check
    _
  $region15: #{forward.1} parent=0 // pred_check_branch
    %20 = sbr.rel (0) target = $region17
  $region16: #{forward.1} parent=0 // pred_region
    _
  $region17: #{forward.1} parent=0 // pred_fallthru
    _
  // Predicated region
  $region18: #{forward.1} parent=0 // pred_check
    _
  $region19: #{forward.1} parent=0 // pred_check_branch
    %22 = sbr.rel (0) target = $region21
  $region20: #{forward.1} parent=0 // pred_region
    _
  $region21: #{forward.1} parent=0 // pred_fallthru
    _
  // Predicated region
  $region22: #{forward.1} parent=0 // pred_check
    _
  $region23: #{forward.1} parent=0 // pred_check_branch
    %24 = sbr.rel (0) target = $region25
  $region24: #{forward.1} parent=0 // pred_region
    _
  $region25: #{forward.1} parent=0 // pred_fallthru
    _
  // Predicated region
  $region26: #{forward.1} parent=0 // pred_check
    _
  $region27: #{forward.1} parent=0 // pred_check_branch
    %26 = sbr.rel (0) target = $region29
  $region28: #{forward.1} parent=0 // pred_region
    _
  $region29: #{forward.1} parent=0 // pred_fallthru
    _
  // Predicated region
  $region30: #{forward.1} parent=0 // pred_check
    _
  $region31: #{forward.1} parent=0 // pred_check_branch
    %28 = sbr.rel (0) target = $region33
  $region32: #{forward.1} parent=0 // pred_region
    _
  $region33: #{forward.1} parent=0 // pred_fallthru
    _
  %v29 = vld [vmem:[%s0] sm:$0xff]
  %v30 = vld [vmem:[%s0 + $0x8] sm:$0xff]
  %v31 = vld [vmem:[%s1] sm:$0xff]
  %v32 = vld [vmem:[%s1 + $0x8] sm:$0xff]
  %v33 = vld [vmem:[%s1 + $0x10] sm:$0xff]
  %v34 = vld [vmem:[%s1 + $0x18] sm:$0xff]
  %v35 = vld [vmem:[%s2] sm:$0x1]
  %v37 = vperm.slane %v35, 0
  %vm39 = vcmask 261120
  %v41 = vsel %vm39, %v29, 0
  %v44 = vsel %vm39, %v30, 0
  %46 = vmatpush.msra.mxu0 0.0
  %47 = vmatpush.msra.mxu0 0.0
  %48 = vmatpush.msra.mxu0 0.0
  %49 = vmatpush.msra.mxu0 0.0
  %50 = vmatpush.msra.mxu0 0.0
  %51 = vmatpush.msra.mxu0 0.0
  %52 = vmatpush.msra.mxu0 0.0
  %53 = vmatpush.msra.mxu0 0.0
  %54 = vmatpush.msra.mxu0 0.0
  %55 = vmatpush.msra.mxu0 0.0
  %56 = vmatpush.msra.mxu0 0.0
  %57 = vmatpush.msra.mxu0 0.0
  %58 = vmatpush.msra.mxu0 %v34
  %59 = vmatpush.msra.mxu0 %v33
  %60 = vmatpush.msra.mxu0 %v32
  %61 = vmatpush.msra.mxu0 %v31
  %62 = vmatmul.f32.gmra.mxu0 %v41
  %v63 = vpop.f32.mrf.mxu0
  %v64 = vadd.f32 %v37, %v63
  %65 = vmatmul.f32.gmra.mxu0 %v44
  %v66 = vpop.f32.mrf.mxu0
  %v67 = vadd.f32 %v37, %v66
  %68 = vdwg.mxu0
  %v69 = vsel %vm39, %v64, 0.0
  %v70 = vrot.slane %v69, 4
  %v71 = vadd.f32 %v69, %v70
  %v72 = vrot.slane %v71, 2
  %v73 = vadd.f32 %v71, %v72
  %v74 = vrot.slane %v73, 1
  %v75 = vadd.f32 %v73, %v74
  %v76 = vrcp.pop 8.0
  %v77 = vmul.f32 8.0, %v76
  %v78 = vsub.f32 1.0, %v77
  %v79 = vmul.f32 %v76, %v78
  %v80 = vadd.f32 %v76, %v79
  %vm81 = vweird.f32 %v76
  %v82 = vsel %vm81, %v76, %v80
  %v83 = vmul.f32 %v75, %v82
  %v84 = vsel %vm39, %v67, 0.0
  %v85 = vrot.slane %v84, 4
  %v86 = vadd.f32 %v84, %v85
  %v87 = vrot.slane %v86, 2
  %v88 = vadd.f32 %v86, %v87
  %v89 = vrot.slane %v88, 1
  %v90 = vadd.f32 %v88, %v89
  %v91 = vmul.f32 %v90, %v82
  %vm92 = vcmask 1040384
  %v93 = vsel %vm92, %v83, %v91
  %v94 = vld [vmem:[%s4] sm:$0xff]
  %v95 = vld [vmem:[%s4 + $0x8] sm:$0xff]
  %v96 = vld [vmem:[%s4 + $0x10] sm:$0xff]
  %v97 = vld [vmem:[%s4 + $0x18] sm:$0xff]
  %v98 = vld [vmem:[%s3] sm:$0x3]
  %v100 = vsel %vm39, %v93, 0
  %102 = vmatpush.msra.mxu0 0.0
  %103 = vmatpush.msra.mxu0 0.0
  %104 = vmatpush.msra.mxu0 0.0
  %105 = vmatpush.msra.mxu0 0.0
  %106 = vmatpush.msra.mxu0 0.0
  %107 = vmatpush.msra.mxu0 0.0
  %108 = vmatpush.msra.mxu0 0.0
  %109 = vmatpush.msra.mxu0 0.0
  %110 = vmatpush.msra.mxu0 0.0
  %111 = vmatpush.msra.mxu0 0.0
  %112 = vmatpush.msra.mxu0 0.0
  %113 = vmatpush.msra.mxu0 0.0
  %114 = vmatpush.msra.mxu0 %v97
  %115 = vmatpush.msra.mxu0 %v96
  %116 = vmatpush.msra.mxu0 %v95
  %117 = vmatpush.msra.mxu0 %v94
  %118 = vmatmul.f32.gmra.mxu0 %v100
  %v119 = vpop.f32.mrf.mxu0
  %v120 = vadd.f32 0.0, %v119
  %121 = vdwg.mxu0
  %v122 = vadd.f32 %v98, %v120
  %v123 = vxor.u32 %v122, 2147483648
  %v124 = vmul.f32 %v123, 1.442695
  %v125 = vpow.pop %v124
  %v126 = vadd.f32 %v125, 1.0
  %v127 = vrcp.pop %v126
  %v128 = vmul.f32 %v126, %v127
  %v129 = vsub.f32 1.0, %v128
  %v130 = vmul.f32 %v127, %v129
  %v131 = vadd.f32 %v127, %v130
  %vm132 = vweird.f32 %v126
  %vm133 = vweird.f32 %v127
  %vm134 = vmor %vm132, %vm133
  %v135 = vsel %vm134, %v127, %v131
  %v136 = vand.u32 2147483647, %v126
  %vm137 = vcmp.eq.f32.partialorder %v136, 8.507059e+37
  %v138 = vand.u32 %v126, 2147483648
  %v139 = vor.u32 1.1754944e-38, %v138
  %v140 = vsel %vm137, %v139, %v135
  %v141 = vmul.f32 1.0, %v140
  %v142 = vtanh.pop %v122
  %v143 = vmul.f32 %v141, 0.0
  %145 = vrot.lane.b32.xlu0 %v142, 64
  %v146 = vpop.permute.xlu0 %145
  %v148 = vmul.f32 %v141, %v146
  %150 = vrot.lane.b32.xlu0 %v148, 32
  %v151 = vpop.permute.xlu0 %150
  %v153 = vadd.f32 %v143, %v151
  %v154 = vtanh.pop %v153
  %156 = vrot.lane.b32.xlu0 %v154, 64
  %v157 = vpop.permute.xlu0 %156
  %v159 = vmul.f32 %v141, %v157
  %161 = vrot.lane.b32.xlu0 %v159, 32
  %v162 = vpop.permute.xlu0 %161
  %vm164 = vcmask 254976
  %165 = vst.msk [vmem:[#allocation2] sm:$0x3] %vm164, %v162
  %s166 = scalar_lea.vmem %s3, 2
  %v167 = vld [vmem:[%s166] sm:$0x3]
  %v168 = vsel %vm39, %v162, 0
  %170 = vmatpush.msra.mxu0 0.0
  %171 = vmatpush.msra.mxu0 0.0
  %172 = vmatpush.msra.mxu0 0.0
  %173 = vmatpush.msra.mxu0 0.0
  %174 = vmatpush.msra.mxu0 0.0
  %175 = vmatpush.msra.mxu0 0.0
  %176 = vmatpush.msra.mxu0 0.0
  %177 = vmatpush.msra.mxu0 0.0
  %178 = vmatpush.msra.mxu0 0.0
  %179 = vmatpush.msra.mxu0 0.0
  %180 = vmatpush.msra.mxu0 0.0
  %181 = vmatpush.msra.mxu0 0.0
  %182 = vmatpush.msra.mxu0 %v97
  %183 = vmatpush.msra.mxu0 %v96
  %184 = vmatpush.msra.mxu0 %v95
  %185 = vmatpush.msra.mxu0 %v94
  %186 = vmatmul.f32.gmra.mxu0 %v168
  %v187 = vpop.f32.mrf.mxu0
  %v188 = vadd.f32 0.0, %v187
  %189 = vdwg.mxu0
  %v190 = vadd.f32 %v167, %v188
  %v191 = vxor.u32 %v190, 2147483648
  %v192 = vmul.f32 %v191, 1.442695
  %v193 = vpow.pop %v192
  %v194 = vadd.f32 %v193, 1.0
  %v195 = vrcp.pop %v194
  %v196 = vmul.f32 %v194, %v195
  %v197 = vsub.f32 1.0, %v196
  %v198 = vmul.f32 %v195, %v197
  %v199 = vadd.f32 %v195, %v198
  %vm200 = vweird.f32 %v194
  %vm201 = vweird.f32 %v195
  %vm202 = vmor %vm200, %vm201
  %v203 = vsel %vm202, %v195, %v199
  %v204 = vand.u32 2147483647, %v194
  %vm205 = vcmp.eq.f32.partialorder %v204, 8.507059e+37
  %v206 = vand.u32 %v194, 2147483648
  %v207 = vor.u32 1.1754944e-38, %v206
  %v208 = vsel %vm205, %v207, %v203
  %v209 = vmul.f32 1.0, %v208
  %v210 = vtanh.pop %v190
  %v211 = vmul.f32 %v209, %v153
  %213 = vrot.lane.b32.xlu0 %v210, 64
  %v214 = vpop.permute.xlu0 %213
  %v216 = vmul.f32 %v209, %v214
  %218 = vrot.lane.b32.xlu0 %v216, 32
  %v219 = vpop.permute.xlu0 %218
  %v221 = vadd.f32 %v211, %v219
  %v222 = vtanh.pop %v221
  %224 = vrot.lane.b32.xlu0 %v222, 64
  %v225 = vpop.permute.xlu0 %224
  %v227 = vmul.f32 %v209, %v225
  %229 = vrot.lane.b32.xlu0 %v227, 32
  %v230 = vpop.permute.xlu0 %229
  %s232 = scalar_lea.vmem [#allocation2], 2
  %233 = vst.msk [vmem:[%s232] sm:$0x3] %vm164, %v230
  %s234 = scalar_lea.vmem %s3, 4
  %v235 = vld [vmem:[%s234] sm:$0x3]
  %v236 = vsel %vm39, %v230, 0
  %238 = vmatpush.msra.mxu0 0.0
  %239 = vmatpush.msra.mxu0 0.0
  %240 = vmatpush.msra.mxu0 0.0
  %241 = vmatpush.msra.mxu0 0.0
  %242 = vmatpush.msra.mxu0 0.0
  %243 = vmatpush.msra.mxu0 0.0
  %244 = vmatpush.msra.mxu0 0.0
  %245 = vmatpush.msra.mxu0 0.0
  %246 = vmatpush.msra.mxu0 0.0
  %247 = vmatpush.msra.mxu0 0.0
  %248 = vmatpush.msra.mxu0 0.0
  %249 = vmatpush.msra.mxu0 0.0
  %250 = vmatpush.msra.mxu0 %v97
  %251 = vmatpush.msra.mxu0 %v96
  %252 = vmatpush.msra.mxu0 %v95
  %253 = vmatpush.msra.mxu0 %v94
  %254 = vmatmul.f32.gmra.mxu0 %v236
  %v255 = vpop.f32.mrf.mxu0
  %v256 = vadd.f32 0.0, %v255
  %257 = vdwg.mxu0
  %v258 = vadd.f32 %v235, %v256
  %v259 = vxor.u32 %v258, 2147483648
  %v260 = vmul.f32 %v259, 1.442695
  %v261 = vpow.pop %v260
  %v262 = vadd.f32 %v261, 1.0
  %v263 = vrcp.pop %v262
  %v264 = vmul.f32 %v262, %v263
  %v265 = vsub.f32 1.0, %v264
  %v266 = vmul.f32 %v263, %v265
  %v267 = vadd.f32 %v263, %v266
  %vm268 = vweird.f32 %v262
  %vm269 = vweird.f32 %v263
  %vm270 = vmor %vm268, %vm269
  %v271 = vsel %vm270, %v263, %v267
  %v272 = vand.u32 2147483647, %v262
  %vm273 = vcmp.eq.f32.partialorder %v272, 8.507059e+37
  %v274 = vand.u32 %v262, 2147483648
  %v275 = vor.u32 1.1754944e-38, %v274
  %v276 = vsel %vm273, %v275, %v271
  %v277 = vmul.f32 1.0, %v276
  %v278 = vtanh.pop %v258
  %v279 = vmul.f32 %v277, %v221
  %281 = vrot.lane.b32.xlu0 %v278, 64
  %v282 = vpop.permute.xlu0 %281
  %v284 = vmul.f32 %v277, %v282
  %286 = vrot.lane.b32.xlu0 %v284, 32
  %v287 = vpop.permute.xlu0 %286
  %v289 = vadd.f32 %v279, %v287
  %v290 = vtanh.pop %v289
  %292 = vrot.lane.b32.xlu0 %v290, 64
  %v293 = vpop.permute.xlu0 %292
  %v295 = vmul.f32 %v277, %v293
  %297 = vrot.lane.b32.xlu0 %v295, 32
  %v298 = vpop.permute.xlu0 %297
  %s300 = scalar_lea.vmem [#allocation2], 4
  %301 = vst.msk [vmem:[%s300] sm:$0x3] %vm164, %v298
  %s302 = scalar_lea.vmem %s3, 6
  %v303 = vld [vmem:[%s302] sm:$0x3]
  %v304 = vsel %vm39, %v298, 0
  %306 = vmatpush.msra.mxu0 0.0
  %307 = vmatpush.msra.mxu0 0.0
  %308 = vmatpush.msra.mxu0 0.0
  %309 = vmatpush.msra.mxu0 0.0
  %310 = vmatpush.msra.mxu0 0.0
  %311 = vmatpush.msra.mxu0 0.0
  %312 = vmatpush.msra.mxu0 0.0
  %313 = vmatpush.msra.mxu0 0.0
  %314 = vmatpush.msra.mxu0 0.0
  %315 = vmatpush.msra.mxu0 0.0
  %316 = vmatpush.msra.mxu0 0.0
  %317 = vmatpush.msra.mxu0 0.0
  %318 = vmatpush.msra.mxu0 %v97
  %319 = vmatpush.msra.mxu0 %v96
  %320 = vmatpush.msra.mxu0 %v95
  %321 = vmatpush.msra.mxu0 %v94
  %322 = vmatmul.f32.gmra.mxu0 %v304
  %v323 = vpop.f32.mrf.mxu0
  %v324 = vadd.f32 0.0, %v323
  %325 = vdwg.mxu0
  %v326 = vadd.f32 %v303, %v324
  %v327 = vxor.u32 %v326, 2147483648
  %v328 = vmul.f32 %v327, 1.442695
  %v329 = vpow.pop %v328
  %v330 = vadd.f32 %v329, 1.0
  %v331 = vrcp.pop %v330
  %v332 = vmul.f32 %v330, %v331
  %v333 = vsub.f32 1.0, %v332
  %v334 = vmul.f32 %v331, %v333
  %v335 = vadd.f32 %v331, %v334
  %vm336 = vweird.f32 %v330
  %vm337 = vweird.f32 %v331
  %vm338 = vmor %vm336, %vm337
  %v339 = vsel %vm338, %v331, %v335
  %v340 = vand.u32 2147483647, %v330
  %vm341 = vcmp.eq.f32.partialorder %v340, 8.507059e+37
  %v342 = vand.u32 %v330, 2147483648
  %v343 = vor.u32 1.1754944e-38, %v342
  %v344 = vsel %vm341, %v343, %v339
  %v345 = vmul.f32 1.0, %v344
  %v346 = vtanh.pop %v326
  %v347 = vmul.f32 %v345, %v289
  %349 = vrot.lane.b32.xlu0 %v346, 64
  %v350 = vpop.permute.xlu0 %349
  %v352 = vmul.f32 %v345, %v350
  %354 = vrot.lane.b32.xlu0 %v352, 32
  %v355 = vpop.permute.xlu0 %354
  %v357 = vadd.f32 %v347, %v355
  %v358 = vtanh.pop %v357
  %360 = vrot.lane.b32.xlu0 %v358, 64
  %v361 = vpop.permute.xlu0 %360
  %v363 = vmul.f32 %v345, %v361
  %365 = vrot.lane.b32.xlu0 %v363, 32
  %v366 = vpop.permute.xlu0 %365
  %s368 = scalar_lea.vmem [#allocation2], 6
  %369 = vst.msk [vmem:[%s368] sm:$0x3] %vm164, %v366
  %s370 = scalar_lea.vmem %s3, 8
  %v371 = vld [vmem:[%s370] sm:$0x3]
  %v372 = vsel %vm39, %v366, 0
  %374 = vmatpush.msra.mxu0 0.0
  %375 = vmatpush.msra.mxu0 0.0
  %376 = vmatpush.msra.mxu0 0.0
  %377 = vmatpush.msra.mxu0 0.0
  %378 = vmatpush.msra.mxu0 0.0
  %379 = vmatpush.msra.mxu0 0.0
  %380 = vmatpush.msra.mxu0 0.0
  %381 = vmatpush.msra.mxu0 0.0
  %382 = vmatpush.msra.mxu0 0.0
  %383 = vmatpush.msra.mxu0 0.0
  %384 = vmatpush.msra.mxu0 0.0
  %385 = vmatpush.msra.mxu0 0.0
  %386 = vmatpush.msra.mxu0 %v97
  %387 = vmatpush.msra.mxu0 %v96
  %388 = vmatpush.msra.mxu0 %v95
  %389 = vmatpush.msra.mxu0 %v94
  %390 = vmatmul.f32.gmra.mxu0 %v372
  %v391 = vpop.f32.mrf.mxu0
  %v392 = vadd.f32 0.0, %v391
  %393 = vdwg.mxu0
  %v394 = vadd.f32 %v371, %v392
  %v395 = vxor.u32 %v394, 2147483648
  %v396 = vmul.f32 %v395, 1.442695
  %v397 = vpow.pop %v396
  %v398 = vadd.f32 %v397, 1.0
  %v399 = vrcp.pop %v398
  %v400 = vmul.f32 %v398, %v399
  %v401 = vsub.f32 1.0, %v400
  %v402 = vmul.f32 %v399, %v401
  %v403 = vadd.f32 %v399, %v402
  %vm404 = vweird.f32 %v398
  %vm405 = vweird.f32 %v399
  %vm406 = vmor %vm404, %vm405
  %v407 = vsel %vm406, %v399, %v403
  %v408 = vand.u32 2147483647, %v398
  %vm409 = vcmp.eq.f32.partialorder %v408, 8.507059e+37
  %v410 = vand.u32 %v398, 2147483648
  %v411 = vor.u32 1.1754944e-38, %v410
  %v412 = vsel %vm409, %v411, %v407
  %v413 = vmul.f32 1.0, %v412
  %v414 = vtanh.pop %v394
  %v415 = vmul.f32 %v413, %v357
  %417 = vrot.lane.b32.xlu0 %v414, 64
  %v418 = vpop.permute.xlu0 %417
  %v420 = vmul.f32 %v413, %v418
  %422 = vrot.lane.b32.xlu0 %v420, 32
  %v423 = vpop.permute.xlu0 %422
  %v425 = vadd.f32 %v415, %v423
  %v426 = vtanh.pop %v425
  %428 = vrot.lane.b32.xlu0 %v426, 64
  %v429 = vpop.permute.xlu0 %428
  %v431 = vmul.f32 %v413, %v429
  %433 = vrot.lane.b32.xlu0 %v431, 32
  %v434 = vpop.permute.xlu0 %433
  %s436 = scalar_lea.vmem [#allocation2], 8
  %437 = vst.msk [vmem:[%s436] sm:$0x3] %vm164, %v434
  %s438 = scalar_lea.vmem %s3, 10
  %v439 = vld [vmem:[%s438] sm:$0x3]
  %v440 = vsel %vm39, %v434, 0
  %442 = vmatpush.msra.mxu0 0.0
  %443 = vmatpush.msra.mxu0 0.0
  %444 = vmatpush.msra.mxu0 0.0
  %445 = vmatpush.msra.mxu0 0.0
  %446 = vmatpush.msra.mxu0 0.0
  %447 = vmatpush.msra.mxu0 0.0
  %448 = vmatpush.msra.mxu0 0.0
  %449 = vmatpush.msra.mxu0 0.0
  %450 = vmatpush.msra.mxu0 0.0
  %451 = vmatpush.msra.mxu0 0.0
  %452 = vmatpush.msra.mxu0 0.0
  %453 = vmatpush.msra.mxu0 0.0
  %454 = vmatpush.msra.mxu0 %v97
  %455 = vmatpush.msra.mxu0 %v96
  %456 = vmatpush.msra.mxu0 %v95
  %457 = vmatpush.msra.mxu0 %v94
  %458 = vmatmul.f32.gmra.mxu0 %v440
  %v459 = vpop.f32.mrf.mxu0
  %v460 = vadd.f32 0.0, %v459
  %461 = vdwg.mxu0
  %v462 = vadd.f32 %v439, %v460
  %v463 = vxor.u32 %v462, 2147483648
  %v464 = vmul.f32 %v463, 1.442695
  %v465 = vpow.pop %v464
  %v466 = vadd.f32 %v465, 1.0
  %v467 = vrcp.pop %v466
  %v468 = vmul.f32 %v466, %v467
  %v469 = vsub.f32 1.0, %v468
  %v470 = vmul.f32 %v467, %v469
  %v471 = vadd.f32 %v467, %v470
  %vm472 = vweird.f32 %v466
  %vm473 = vweird.f32 %v467
  %vm474 = vmor %vm472, %vm473
  %v475 = vsel %vm474, %v467, %v471
  %v476 = vand.u32 2147483647, %v466
  %vm477 = vcmp.eq.f32.partialorder %v476, 8.507059e+37
  %v478 = vand.u32 %v466, 2147483648
  %v479 = vor.u32 1.1754944e-38, %v478
  %v480 = vsel %vm477, %v479, %v475
  %v481 = vmul.f32 1.0, %v480
  %v482 = vtanh.pop %v462
  %v483 = vmul.f32 %v481, %v425
  %485 = vrot.lane.b32.xlu0 %v482, 64
  %v486 = vpop.permute.xlu0 %485
  %v488 = vmul.f32 %v481, %v486
  %490 = vrot.lane.b32.xlu0 %v488, 32
  %v491 = vpop.permute.xlu0 %490
  %v493 = vadd.f32 %v483, %v491
  %v494 = vtanh.pop %v493
  %496 = vrot.lane.b32.xlu0 %v494, 64
  %v497 = vpop.permute.xlu0 %496
  %v499 = vmul.f32 %v481, %v497
  %501 = vrot.lane.b32.xlu0 %v499, 32
  %v502 = vpop.permute.xlu0 %501
  %s504 = scalar_lea.vmem [#allocation2], 10
  %505 = vst.msk [vmem:[%s504] sm:$0x3] %vm164, %v502
  %s506 = scalar_lea.vmem %s3, 12
  %v507 = vld [vmem:[%s506] sm:$0x3]
  %v508 = vsel %vm39, %v502, 0
  %510 = vmatpush.msra.mxu0 0.0
  %511 = vmatpush.msra.mxu0 0.0
  %512 = vmatpush.msra.mxu0 0.0
  %513 = vmatpush.msra.mxu0 0.0
  %514 = vmatpush.msra.mxu0 0.0
  %515 = vmatpush.msra.mxu0 0.0
  %516 = vmatpush.msra.mxu0 0.0
  %517 = vmatpush.msra.mxu0 0.0
  %518 = vmatpush.msra.mxu0 0.0
  %519 = vmatpush.msra.mxu0 0.0
  %520 = vmatpush.msra.mxu0 0.0
  %521 = vmatpush.msra.mxu0 0.0
  %522 = vmatpush.msra.mxu0 %v97
  %523 = vmatpush.msra.mxu0 %v96
  %524 = vmatpush.msra.mxu0 %v95
  %525 = vmatpush.msra.mxu0 %v94
  %526 = vmatmul.f32.gmra.mxu0 %v508
  %v527 = vpop.f32.mrf.mxu0
  %v528 = vadd.f32 0.0, %v527
  %529 = vdwg.mxu0
  %v530 = vadd.f32 %v507, %v528
  %v531 = vxor.u32 %v530, 2147483648
  %v532 = vmul.f32 %v531, 1.442695
  %v533 = vpow.pop %v532
  %v534 = vadd.f32 %v533, 1.0
  %v535 = vrcp.pop %v534
  %v536 = vmul.f32 %v534, %v535
  %v537 = vsub.f32 1.0, %v536
  %v538 = vmul.f32 %v535, %v537
  %v539 = vadd.f32 %v535, %v538
  %vm540 = vweird.f32 %v534
  %vm541 = vweird.f32 %v535
  %vm542 = vmor %vm540, %vm541
  %v543 = vsel %vm542, %v535, %v539
  %v544 = vand.u32 2147483647, %v534
  %vm545 = vcmp.eq.f32.partialorder %v544, 8.507059e+37
  %v546 = vand.u32 %v534, 2147483648
  %v547 = vor.u32 1.1754944e-38, %v546
  %v548 = vsel %vm545, %v547, %v543
  %v549 = vmul.f32 1.0, %v548
  %v550 = vtanh.pop %v530
  %v551 = vmul.f32 %v549, %v493
  %553 = vrot.lane.b32.xlu0 %v550, 64
  %v554 = vpop.permute.xlu0 %553
  %v556 = vmul.f32 %v549, %v554
  %558 = vrot.lane.b32.xlu0 %v556, 32
  %v559 = vpop.permute.xlu0 %558
  %v561 = vadd.f32 %v551, %v559
  %v562 = vtanh.pop %v561
  %564 = vrot.lane.b32.xlu0 %v562, 64
  %v565 = vpop.permute.xlu0 %564
  %v567 = vmul.f32 %v549, %v565
  %569 = vrot.lane.b32.xlu0 %v567, 32
  %v570 = vpop.permute.xlu0 %569
  %s572 = scalar_lea.vmem [#allocation2], 12
  %573 = vst.msk [vmem:[%s572] sm:$0x3] %vm164, %v570
  %s574 = scalar_lea.vmem %s3, 14
  %v575 = vld [vmem:[%s574] sm:$0x3]
  %v576 = vsel %vm39, %v570, 0
  %578 = vmatpush.msra.mxu0 0.0
  %579 = vmatpush.msra.mxu0 0.0
  %580 = vmatpush.msra.mxu0 0.0
  %581 = vmatpush.msra.mxu0 0.0
  %582 = vmatpush.msra.mxu0 0.0
  %583 = vmatpush.msra.mxu0 0.0
  %584 = vmatpush.msra.mxu0 0.0
  %585 = vmatpush.msra.mxu0 0.0
  %586 = vmatpush.msra.mxu0 0.0
  %587 = vmatpush.msra.mxu0 0.0
  %588 = vmatpush.msra.mxu0 0.0
  %589 = vmatpush.msra.mxu0 0.0
  %590 = vmatpush.msra.mxu0 %v97
  %591 = vmatpush.msra.mxu0 %v96
  %592 = vmatpush.msra.mxu0 %v95
  %593 = vmatpush.msra.mxu0 %v94
  %594 = vmatmul.f32.gmra.mxu0 %v576
  %v595 = vpop.f32.mrf.mxu0
  %v596 = vadd.f32 0.0, %v595
  %597 = vdwg.mxu0
  %v598 = vadd.f32 %v575, %v596
  %v599 = vxor.u32 %v598, 2147483648
  %v600 = vmul.f32 %v599, 1.442695
  %v601 = vpow.pop %v600
  %v602 = vadd.f32 %v601, 1.0
  %v603 = vrcp.pop %v602
  %v604 = vmul.f32 %v602, %v603
  %v605 = vsub.f32 1.0, %v604
  %v606 = vmul.f32 %v603, %v605
  %v607 = vadd.f32 %v603, %v606
  %vm608 = vweird.f32 %v602
  %vm609 = vweird.f32 %v603
  %vm610 = vmor %vm608, %vm609
  %v611 = vsel %vm610, %v603, %v607
  %v612 = vand.u32 2147483647, %v602
  %vm613 = vcmp.eq.f32.partialorder %v612, 8.507059e+37
  %v614 = vand.u32 %v602, 2147483648
  %v615 = vor.u32 1.1754944e-38, %v614
  %v616 = vsel %vm613, %v615, %v611
  %v617 = vmul.f32 1.0, %v616
  %v618 = vtanh.pop %v598
  %v619 = vmul.f32 %v617, %v561
  %621 = vrot.lane.b32.xlu0 %v618, 64
  %v622 = vpop.permute.xlu0 %621
  %v624 = vmul.f32 %v617, %v622
  %626 = vrot.lane.b32.xlu0 %v624, 32
  %v627 = vpop.permute.xlu0 %626
  %v629 = vadd.f32 %v619, %v627
  %v630 = vtanh.pop %v629
  %632 = vrot.lane.b32.xlu0 %v630, 64
  %v633 = vpop.permute.xlu0 %632
  %v635 = vmul.f32 %v617, %v633
  %637 = vrot.lane.b32.xlu0 %v635, 32
  %v638 = vpop.permute.xlu0 %637
  %s640 = scalar_lea.vmem [#allocation2], 14
  %641 = vst.msk [vmem:[%s640] sm:$0x3] %vm164, %v638
  %v642 = vld [vmem:[#allocation2] sm:$0x3]
  %v643 = vld [vmem:[#allocation2 + $0x2] sm:$0x3]
  %v644 = vld [vmem:[#allocation2 + $0x4] sm:$0x3]
  %v645 = vld [vmem:[#allocation2 + $0x6] sm:$0x3]
  %v646 = vld [vmem:[#allocation2 + $0x8] sm:$0x3]
  %v647 = vld [vmem:[#allocation2 + $0xa] sm:$0x3]
  %v648 = vld [vmem:[#allocation2 + $0xc] sm:$0x3]
  %v649 = vld [vmem:[#allocation2 + $0xe] sm:$0x3]
  %v650 = vld [vmem:[%s5] sm:$0xff]
  %v651 = vld [vmem:[%s5 + $0x8] sm:$0xff]
  %v652 = vld [vmem:[%s5 + $0x10] sm:$0xff]
  %v653 = vld [vmem:[%s5 + $0x18] sm:$0xff]
  %v654 = vld [vmem:[%s6] sm:$0xff]
  %v655 = vld [vmem:[%s6 + $0x8] sm:$0xff]
  %v656 = vld [vmem:[%s6 + $0x10] sm:$0xff]
  %v657 = vld [vmem:[%s6 + $0x18] sm:$0xff]
  %v658 = vld [vmem:[%s6 + $0x20] sm:$0xff]
  %v659 = vld [vmem:[%s6 + $0x28] sm:$0xff]
  %v660 = vld [vmem:[%s6 + $0x30] sm:$0xff]
  %v661 = vld [vmem:[%s6 + $0x38] sm:$0xff]
  %v662 = vld [vmem:[%s7] sm:$0x1]
  %v671 = vrot.slane %v643, 7
  %vm672 = vcmask 1041409
  %v673 = vsel %vm672, %v671, %v642
  %v674 = vrot.slane %v644, 6
  %vm675 = vcmask 1042434
  %v676 = vsel %vm675, %v674, %v673
  %v677 = vrot.slane %v645, 5
  %vm678 = vcmask 1043459
  %v679 = vsel %vm678, %v677, %v676
  %v680 = vrot.slane %v646, 4
  %vm681 = vcmask 1044484
  %v682 = vsel %vm681, %v680, %v679
  %v683 = vrot.slane %v647, 3
  %vm684 = vcmask 1045509
  %v685 = vsel %vm684, %v683, %v682
  %v686 = vrot.slane %v648, 2
  %vm687 = vcmask 1046534
  %v688 = vsel %vm687, %v686, %v685
  %v689 = vrot.slane %v649, 1
  %vm690 = vcmask 1047559
  %v691 = vsel %vm690, %v689, %v688
  %v692 = vsel %vm39, %v691, 0
  %694 = vmatpush.msra.mxu0 0.0
  %695 = vmatpush.msra.mxu0 0.0
  %696 = vmatpush.msra.mxu0 0.0
  %697 = vmatpush.msra.mxu0 0.0
  %698 = vmatpush.msra.mxu0 0.0
  %699 = vmatpush.msra.mxu0 0.0
  %700 = vmatpush.msra.mxu0 0.0
  %701 = vmatpush.msra.mxu0 0.0
  %702 = vmatpush.msra.mxu0 0.0
  %703 = vmatpush.msra.mxu0 0.0
  %704 = vmatpush.msra.mxu0 0.0
  %705 = vmatpush.msra.mxu0 0.0
  %706 = vmatpush.msra.mxu0 %v653
  %707 = vmatpush.msra.mxu0 %v652
  %708 = vmatpush.msra.mxu0 %v651
  %709 = vmatpush.msra.mxu0 %v650
  %710 = vmatmul.f32.gmra.mxu0 %v692
  %v711 = vpop.f32.mrf.mxu0
  %v712 = vadd.f32 0.0, %v711
  %713 = vdwg.mxu0
  %v715 = vsel %vm39, %v712, 0
  %v718 = vsel %vm39, %v64, 0
  %720 = vmatpush.xpose.msra.mxu0 0.0
  %721 = vmatpush.xpose.msra.mxu0 0.0
  %722 = vmatpush.xpose.msra.mxu0 0.0
  %723 = vmatpush.xpose.msra.mxu0 0.0
  %724 = vmatpush.xpose.msra.mxu0 0.0
  %725 = vmatpush.xpose.msra.mxu0 0.0
  %726 = vmatpush.xpose.msra.mxu0 0.0
  %727 = vmatpush.xpose.msra.mxu0 0.0
  %728 = vmatpush.xpose.msra.mxu0 0.0
  %729 = vmatpush.xpose.msra.mxu0 0.0
  %730 = vmatpush.xpose.msra.mxu0 0.0
  %731 = vmatpush.xpose.msra.mxu0 0.0
  %732 = vmatpush.xpose.msra.mxu0 0.0
  %733 = vmatpush.xpose.msra.mxu0 0.0
  %734 = vmatpush.xpose.msra.mxu0 0.0
  %735 = vmatpush.xpose.msra.mxu0 %v718
  %736 = vmatmul.f32.gmra.mxu0 %v715
  %v737 = vpop.f32.mrf.mxu0
  %v738 = vadd.f32 0.0, %v737
  %739 = vdwg.mxu0
  %vm740 = vcmask 64512
  %v741 = vsel %vm740, %v738, -inf
  %742 = vmax.xlane.f32.xlu0 %v741
  %v743 = vpop.xlane.xlu0 %742
  %v744 = vsub.f32 %v738, %v743
  %v745 = vmul.f32 %v744, 1.442695
  %v746 = vpow.pop %v745
  %v747 = vsel %vm740, %v746, 0.0
  %748 = vadd.xlane.f32.xlu0 %v747
  %v749 = vpop.xlane.xlu0 %748
  %v750 = vrcp.pop %v749
  %v751 = vmul.f32 %v749, %v750
  %v752 = vsub.f32 1.0, %v751
  %v753 = vmul.f32 %v750, %v752
  %v754 = vadd.f32 %v750, %v753
  %vm755 = vweird.f32 %v749
  %vm756 = vweird.f32 %v750
  %vm757 = vmor %vm755, %vm756
  %v758 = vsel %vm757, %v750, %v754
  %v759 = vand.u32 2147483647, %v749
  %vm760 = vcmp.eq.f32.partialorder %v759, 8.507059e+37
  %v761 = vand.u32 %v749, 2147483648
  %v762 = vor.u32 1.1754944e-38, %v761
  %v763 = vsel %vm760, %v762, %v758
  %v764 = vmul.f32 %v746, %v763
  %v766 = vsel %vm740, %v764, 0
  %768 = vmatpush.msra.mxu0 0.0
  %769 = vmatpush.msra.mxu0 0.0
  %770 = vmatpush.msra.mxu0 0.0
  %771 = vmatpush.msra.mxu0 0.0
  %772 = vmatpush.msra.mxu0 0.0
  %773 = vmatpush.msra.mxu0 0.0
  %774 = vmatpush.msra.mxu0 0.0
  %775 = vmatpush.msra.mxu0 0.0
  %776 = vmatpush.msra.mxu0 0.0
  %777 = vmatpush.msra.mxu0 0.0
  %778 = vmatpush.msra.mxu0 0.0
  %779 = vmatpush.msra.mxu0 0.0
  %780 = vmatpush.msra.mxu0 0.0
  %781 = vmatpush.msra.mxu0 0.0
  %782 = vmatpush.msra.mxu0 0.0
  %783 = vmatpush.msra.mxu0 %v64
  %784 = vmatmul.f32.gmra.mxu0 %v766
  %v785 = vpop.f32.mrf.mxu0
  %v786 = vadd.f32 0.0, %v785
  %787 = vdwg.mxu0
  %790 = vrot.lane.b32.xlu0 %v786, 32
  %v791 = vpop.permute.xlu0 %790
  %v793 = vsel %vm39, %v691, %v791
  %v795 = vperm.slane %v662, 0
  %vm797 = vcmask 523264
  %v799 = vsel %vm797, %v793, 0
  %801 = vmatpush.msra.mxu0 0.0
  %802 = vmatpush.msra.mxu0 0.0
  %803 = vmatpush.msra.mxu0 0.0
  %804 = vmatpush.msra.mxu0 0.0
  %805 = vmatpush.msra.mxu0 0.0
  %806 = vmatpush.msra.mxu0 0.0
  %807 = vmatpush.msra.mxu0 0.0
  %808 = vmatpush.msra.mxu0 0.0
  %809 = vmatpush.msra.mxu0 %v661
  %810 = vmatpush.msra.mxu0 %v660
  %811 = vmatpush.msra.mxu0 %v659
  %812 = vmatpush.msra.mxu0 %v658
  %813 = vmatpush.msra.mxu0 %v657
  %814 = vmatpush.msra.mxu0 %v656
  %815 = vmatpush.msra.mxu0 %v655
  %816 = vmatpush.msra.mxu0 %v654
  %817 = vmatmul.f32.gmra.mxu0 %v799
  %v818 = vpop.f32.mrf.mxu0
  %v819 = vadd.f32 %v795, %v818
  %820 = vdwg.mxu0
  %v821 = vrot.slane %v642, 1
  %v822 = vsel %vm672, %v643, %v821
  %v823 = vrot.slane %v644, 7
  %v824 = vsel %vm675, %v823, %v822
  %v825 = vrot.slane %v645, 6
  %v826 = vsel %vm678, %v825, %v824
  %v827 = vrot.slane %v646, 5
  %v828 = vsel %vm681, %v827, %v826
  %v829 = vrot.slane %v647, 4
  %v830 = vsel %vm684, %v829, %v828
  %v831 = vrot.slane %v648, 3
  %v832 = vsel %vm687, %v831, %v830
  %v833 = vrot.slane %v649, 2
  %v834 = vsel %vm690, %v833, %v832
  %v835 = vsel %vm39, %v834, 0
  %837 = vmatpush.msra.mxu0 0.0
  %838 = vmatpush.msra.mxu0 0.0
  %839 = vmatpush.msra.mxu0 0.0
  %840 = vmatpush.msra.mxu0 0.0
  %841 = vmatpush.msra.mxu0 0.0
  %842 = vmatpush.msra.mxu0 0.0
  %843 = vmatpush.msra.mxu0 0.0
  %844 = vmatpush.msra.mxu0 0.0
  %845 = vmatpush.msra.mxu0 0.0
  %846 = vmatpush.msra.mxu0 0.0
  %847 = vmatpush.msra.mxu0 0.0
  %848 = vmatpush.msra.mxu0 0.0
  %849 = vmatpush.msra.mxu0 %v653
  %850 = vmatpush.msra.mxu0 %v652
  %851 = vmatpush.msra.mxu0 %v651
  %852 = vmatpush.msra.mxu0 %v650
  %853 = vmatmul.f32.gmra.mxu0 %v835
  %v854 = vpop.f32.mrf.mxu0
  %v855 = vadd.f32 0.0, %v854
  %856 = vdwg.mxu0
  %v858 = vsel %vm39, %v855, 0
  %v861 = vsel %vm39, %v67, 0
  %863 = vmatpush.xpose.msra.mxu0 0.0
  %864 = vmatpush.xpose.msra.mxu0 0.0
  %865 = vmatpush.xpose.msra.mxu0 0.0
  %866 = vmatpush.xpose.msra.mxu0 0.0
  %867 = vmatpush.xpose.msra.mxu0 0.0
  %868 = vmatpush.xpose.msra.mxu0 0.0
  %869 = vmatpush.xpose.msra.mxu0 0.0
  %870 = vmatpush.xpose.msra.mxu0 0.0
  %871 = vmatpush.xpose.msra.mxu0 0.0
  %872 = vmatpush.xpose.msra.mxu0 0.0
  %873 = vmatpush.xpose.msra.mxu0 0.0
  %874 = vmatpush.xpose.msra.mxu0 0.0
  %875 = vmatpush.xpose.msra.mxu0 0.0
  %876 = vmatpush.xpose.msra.mxu0 0.0
  %877 = vmatpush.xpose.msra.mxu0 0.0
  %878 = vmatpush.xpose.msra.mxu0 %v861
  %879 = vmatmul.f32.gmra.mxu0 %v858
  %v880 = vpop.f32.mrf.mxu0
  %v881 = vadd.f32 0.0, %v880
  %882 = vdwg.mxu0
  %v883 = vsel %vm740, %v881, -inf
  %884 = vmax.xlane.f32.xlu0 %v883
  %v885 = vpop.xlane.xlu0 %884
  %v886 = vsub.f32 %v881, %v885
  %v887 = vmul.f32 %v886, 1.442695
  %v888 = vpow.pop %v887
  %v889 = vsel %vm740, %v888, 0.0
  %890 = vadd.xlane.f32.xlu0 %v889
  %v891 = vpop.xlane.xlu0 %890
  %v892 = vrcp.pop %v891
  %v893 = vmul.f32 %v891, %v892
  %v894 = vsub.f32 1.0, %v893
  %v895 = vmul.f32 %v892, %v894
  %v896 = vadd.f32 %v892, %v895
  %vm897 = vweird.f32 %v891
  %vm898 = vweird.f32 %v892
  %vm899 = vmor %vm897, %vm898
  %v900 = vsel %vm899, %v892, %v896
  %v901 = vand.u32 2147483647, %v891
  %vm902 = vcmp.eq.f32.partialorder %v901, 8.507059e+37
  %v903 = vand.u32 %v891, 2147483648
  %v904 = vor.u32 1.1754944e-38, %v903
  %v905 = vsel %vm902, %v904, %v900
  %v906 = vmul.f32 %v888, %v905
  %v908 = vsel %vm740, %v906, 0
  %910 = vmatpush.msra.mxu0 0.0
  %911 = vmatpush.msra.mxu0 0.0
  %912 = vmatpush.msra.mxu0 0.0
  %913 = vmatpush.msra.mxu0 0.0
  %914 = vmatpush.msra.mxu0 0.0
  %915 = vmatpush.msra.mxu0 0.0
  %916 = vmatpush.msra.mxu0 0.0
  %917 = vmatpush.msra.mxu0 0.0
  %918 = vmatpush.msra.mxu0 0.0
  %919 = vmatpush.msra.mxu0 0.0
  %920 = vmatpush.msra.mxu0 0.0
  %921 = vmatpush.msra.mxu0 0.0
  %922 = vmatpush.msra.mxu0 0.0
  %923 = vmatpush.msra.mxu0 0.0
  %924 = vmatpush.msra.mxu0 0.0
  %925 = vmatpush.msra.mxu0 %v67
  %926 = vmatmul.f32.gmra.mxu0 %v908
  %v927 = vpop.f32.mrf.mxu0
  %v928 = vadd.f32 0.0, %v927
  %929 = vdwg.mxu0
  %v930 = vsel %vm675, %v671, %v642
  %v931 = vsel %vm678, %v674, %v930
  %v932 = vsel %vm681, %v677, %v931
  %v933 = vsel %vm684, %v680, %v932
  %v934 = vsel %vm687, %v683, %v933
  %v935 = vsel %vm690, %v686, %v934
  %v939 = vrot.slane %v928, 7
  %940 = vrot.lane.b32.xlu0 %v939, 32
  %v941 = vpop.permute.xlu0 %940
  %v943 = vsel %vm39, %v935, %v941
  %v944 = vsel %vm39, %v689, %v941
  %vm947 = vcmask 1046528
  %v948 = vrot.slane %v943, 1
  %v949 = vrot.slane %v944, 1
  %v950 = vsel %vm947, %v948, %v949
  %v951 = vsel %vm797, %v950, 0
  %953 = vmatpush.msra.mxu0 0.0
  %954 = vmatpush.msra.mxu0 0.0
  %955 = vmatpush.msra.mxu0 0.0
  %956 = vmatpush.msra.mxu0 0.0
  %957 = vmatpush.msra.mxu0 0.0
  %958 = vmatpush.msra.mxu0 0.0
  %959 = vmatpush.msra.mxu0 0.0
  %960 = vmatpush.msra.mxu0 0.0
  %961 = vmatpush.msra.mxu0 %v661
  %962 = vmatpush.msra.mxu0 %v660
  %963 = vmatpush.msra.mxu0 %v659
  %964 = vmatpush.msra.mxu0 %v658
  %965 = vmatpush.msra.mxu0 %v657
  %966 = vmatpush.msra.mxu0 %v656
  %967 = vmatpush.msra.mxu0 %v655
  %968 = vmatpush.msra.mxu0 %v654
  %969 = vmatmul.f32.gmra.mxu0 %v951
  %v970 = vpop.f32.mrf.mxu0
  %v971 = vadd.f32 %v795, %v970
  %972 = vdwg.mxu0
  %974 = vrot.lane.b32.xlu0 %v971, 64
  %v975 = vpop.permute.xlu0 %974
  %v977 = vsel %vm797, %v819, %v975
  %978 = vst [vmem:[%s8] sm:$0xff] %v977
  // Predicated region
  $region34: #{forward.1} parent=0 // pred_check
    _
  $region35: #{forward.1} parent=0 // pred_check_branch
    %980 = sbr.rel (0) target = $region37
  $region36: #{forward.1} parent=0 // pred_region
    _
  $region37: #{forward.1} parent=0 // pred_fallthru
    _
  // Predicated region
  $region38: #{forward.1} parent=0 // pred_check
    _
  $region39: #{forward.1} parent=0 // pred_check_branch
    %982 = sbr.rel (0) target = $region41
  $region40: #{forward.1} parent=0 // pred_region
    _
  $region41: #{forward.1} parent=0 // pred_fallthru
    _

</llo_original>
